<compile_context>
chip_gen: v7x
topology: tpu7x:2x2x1
jax: 0.10.0
libtpu: 0.0.40
codegen_flags: <defaults>
</compile_context>

<pallas_src>
from functools import partial

import jax
import jax.numpy as jnp
from jax.experimental import pallas as pl
from jax.experimental.pallas import tpu as pltpu


def _round_up(a, m):
    return (a + m - 1) // m * m


def _block_kernel(x_ref, w_ref, pars_ref, gm_ref, ss_ref, mask_ref, o_ref,
                  sum_ref, *, eps, tm, nm, twin, p0, w_img, cout):
    # x_ref:   (1, Cin, L)     zero-padded, flattened input (one batch element, resident)
    # w_ref:   (9, Cout, Cin)  conv taps, k = kh*3 + kw
    # pars_ref:(Cout, 3)       [conv bias | gn gamma | gn beta]
    # gm_ref:  (Cout, Cout)    group-averaging matrix, pre-scaled by 1/(Cg*M)
    # ss_ref:  (1, Cout, 2)    per-batch [scale | shift] (FiLM)
    # mask_ref:(3, Mpad)       lane masks: [left (w!=0) | valid (p<M) | right (w!=W-1)]
    # o_ref:   (1, Cout, Mpad) resident output block; holds raw conv result until the
    #                          last spatial step, then normalized + SiLU'd in place
    # sum_ref: (Cout, 1)       f32 per-channel running sum (GroupNorm mean)
    mi = pl.program_id(1)
    base = pl.multiple_of(mi * tm, 128)

    # one aligned halo window per tile: output lanes [base, base+tm) need input
    # indices [base, base+twin) of the padded flattened image.
    xw = x_ref[0, :, pl.ds(base, twin)]                       # (Cin, twin)

    mrow = mask_ref[:, pl.ds(base, tm)]                       # (3, tm)
    m_left, m_valid, m_right = mrow[0:1, :], mrow[1:2, :], mrow[2:3, :]

    # ---- 3x3 conv: 9 accumulating MXU dots on statically shifted taps ----
    y = None
    for k in range(9):
        dh, dw = k // 3 - 1, k % 3 - 1
        off = p0 + dh * w_img + dw                            # static, in [0, 2*W+2]
        xt = xw[:, off:off + tm]                              # (Cin, tm), lane rotate
        if dw == -1:
            xt = xt * m_left                                  # zero wrapped left column
        elif dw == 1:
            xt = xt * m_right                                 # zero wrapped right column
        d = jnp.dot(w_ref[k], xt, preferred_element_type=jnp.float32)
        y = d if y is None else y + d
    y = y + pars_ref[:, 0:1].astype(jnp.float32)              # conv bias

    # stash the conv result in the resident output block (re-read at finalize)
    o_ref[0, :, pl.ds(base, tm)] = y.astype(o_ref.dtype)

    # per-channel running sum over valid spatial positions (for the GroupNorm mean)
    tsum = jnp.sum(y * m_valid.astype(jnp.float32), axis=1, keepdims=True)

    @pl.when(mi == 0)
    def _():
        sum_ref[...] = tsum

    @pl.when(mi > 0)
    def _():
        sum_ref[...] = sum_ref[...] + tsum

    # ---- finalize: centered GroupNorm -> fused affine (+FiLM) -> SiLU, in place ----
    @pl.when(mi == nm - 1)
    def _():
        mean = jnp.dot(gm_ref[...], sum_ref[...],
                       preferred_element_type=jnp.float32)    # (Cout, 1) per-channel

        def csq_body(j, carry):                               # centered second pass
            st = pl.multiple_of(j * tm, 128)
            z = o_ref[0, :, pl.ds(st, tm)].astype(jnp.float32)
            v = mask_ref[1:2, pl.ds(st, tm)].astype(jnp.float32)
            diff = (z - mean) * v
            return carry + jnp.sum(diff * diff, axis=1, keepdims=True)

        csq = jax.lax.fori_loop(0, nm, csq_body,
                                jnp.zeros((cout, 1), jnp.float32), unroll=True)
        var = jnp.dot(gm_ref[...], csq, preferred_element_type=jnp.float32)
        inv = jax.lax.rsqrt(var + eps)

        gamma = pars_ref[:, 1:2].astype(jnp.float32)
        beta = pars_ref[:, 2:3].astype(jnp.float32)
        scale = ss_ref[0, :, 0:1].astype(jnp.float32)
        shift = ss_ref[0, :, 1:2].astype(jnp.float32)

        # fold GroupNorm affine + FiLM (x*(scale+1)+shift) into per-channel a, c
        a = gamma * inv * (scale + 1.0)
        c = (beta - gamma * inv * mean) * (scale + 1.0) + shift

        def out_body(j, carry):
            st = pl.multiple_of(j * tm, 128)
            z = o_ref[0, :, pl.ds(st, tm)].astype(jnp.float32)
            z = z * a + c
            o_ref[0, :, pl.ds(st, tm)] = (z * jax.nn.sigmoid(z)).astype(o_ref.dtype)
            return carry

        jax.lax.fori_loop(0, nm, out_body, 0, unroll=True)


def block_forward(x_nchw, params, scale_shift=None, *, groups=8, eps=1e-5):
    """x_nchw: (B, Cin, H, W). Returns (B, Cout, H, W), matching the PyTorch module."""
    w, b, gamma, beta = params["w"], params["b"], params["gamma"], params["beta"]
    B, Cin, H, W = x_nchw.shape
    KH, KW, _, Cout = w.shape
    assert (KH, KW) == (3, 3), "Block uses a 3x3 conv"
    assert Cout % groups == 0, "GroupNorm requires Cout % groups == 0"
    M = H * W
    Cg = Cout // groups
    dt = x_nchw.dtype

    if scale_shift is None:                                   # scale_shift is optional
        scale = jnp.zeros((B, Cout), dt)
        shift = jnp.zeros((B, Cout), dt)
    else:
        scale, shift = scale_shift

    # ---- spatial tiling: pad M to a multiple of 128, big lane tiles (up to 512) ----
    Mpad = _round_up(M, 128)
    if Mpad <= 512:
        TM = Mpad                                             # single tile per batch
    else:
        TM = next(c for c in (512, 384, 256, 128) if Mpad % c == 0)
    NM = Mpad // TM
    P0 = W + 1                                                # front zero pad (one row + 1)
    TWIN = _round_up(TM + 2 * W + 2, 128)                     # aligned halo window
    L = (NM - 1) * TM + TWIN                                  # padded flat-input length

    # ---- wrapper-side layout (cheap): flatten + zero-pad only, no 9x im2col slab ----
    x_flat = x_nchw.reshape(B, Cin, M)
    x_pad = jnp.pad(x_flat, ((0, 0), (0, 0), (P0, L - M - P0)))

    w9 = jnp.transpose(w, (0, 1, 3, 2)).reshape(9, Cout, Cin)  # (tap, out, in)
    pars = jnp.stack([b, gamma, beta], axis=1)                 # (Cout, 3)
    ssp = jnp.stack([scale, shift], axis=-1)                   # (B, Cout, 2)

    gidx = jnp.arange(Cout) // Cg
    gm = (gidx[:, None] == gidx[None, :]).astype(jnp.float32) / float(Cg * M)

    p = jnp.arange(Mpad)
    wcol = p % W
    masks = jnp.stack([wcol != 0, p < M, wcol != W - 1], axis=0).astype(dt)  # (3, Mpad)

    # ---- VMEM budget from the actual shapes (not a hard-coded 32 MiB) ----
    def padded_bytes(shape, dtype):
        s = list(shape)
        s[-1] = _round_up(s[-1], 128)
        if len(s) >= 2:
            s[-2] = _round_up(s[-2], 8)
        n = 1
        for d in s:
            n *= d
        return n * jnp.dtype(dtype).itemsize

    needed = 2 * (padded_bytes((Cin, L), dt)
                  + padded_bytes((Cout, Mpad), dt)
                  + 9 * padded_bytes((Cout, Cin), dt)
                  + padded_bytes((Cout, 3), dt)
                  + padded_bytes((Cout, Cout), jnp.float32)
                  + padded_bytes((Cout, 2), dt)
                  + padded_bytes((3, Mpad), dt)
                  + padded_bytes((Cout, 1), jnp.float32))
    try:
        cap = int(pltpu.get_tpu_info().vmem_capacity_bytes)
    except Exception:
        cap = 128 * 1024 * 1024
    vmem_limit = int(min(max(needed + (16 << 20), 32 << 20), int(cap * 0.85)))

    kernel = partial(_block_kernel, eps=eps, tm=TM, nm=NM, twin=TWIN, p0=P0,
                     w_img=W, cout=Cout)

    out = pl.pallas_call(
        kernel,
        out_shape=jax.ShapeDtypeStruct((B, Cout, Mpad), dt),
        grid_spec=pltpu.PrefetchScalarGridSpec(
            num_scalar_prefetch=0,
            grid=(B, NM),
            in_specs=[
                pl.BlockSpec((1, Cin, L), lambda bi, mi: (bi, 0, 0)),     # input, resident/batch
                pl.BlockSpec((9, Cout, Cin), lambda bi, mi: (0, 0, 0)),   # conv taps
                pl.BlockSpec((Cout, 3), lambda bi, mi: (0, 0)),           # bias/gamma/beta
                pl.BlockSpec((Cout, Cout), lambda bi, mi: (0, 0)),        # group-avg matrix
                pl.BlockSpec((1, Cout, 2), lambda bi, mi: (bi, 0, 0)),    # scale/shift
                pl.BlockSpec((3, Mpad), lambda bi, mi: (0, 0)),           # lane masks
            ],
            out_specs=pl.BlockSpec((1, Cout, Mpad), lambda bi, mi: (bi, 0, 0)),
            scratch_shapes=[pltpu.VMEM((Cout, 1), jnp.float32)],          # running sum
        ),
        compiler_params=pltpu.CompilerParams(
            # TODO(synk): on v7x (2 TensorCores) switch the batch axis to
            # pltpu.CORE_PARALLEL; plain "parallel" is kept for portability.
            dimension_semantics=("parallel", "arbitrary"),
            vmem_limit_bytes=vmem_limit,
        ),
    )(x_pad, w9, pars, gm, ssp, masks)

    return out[:, :, :M].reshape(B, Cout, H, W)


def block_reference(x_nchw, params, scale_shift=None, *, groups=8, eps=1e-5):
    """Pure-JAX reference (mirrors the PyTorch forward) for correctness check."""
    w, b, gamma, beta = params["w"], params["b"], params["gamma"], params["beta"]
    y = jax.lax.conv_general_dilated(
        x_nchw, w, window_strides=(1, 1), padding="SAME",
        dimension_numbers=("NCHW", "HWIO", "NCHW"))
    y = y + b[None, :, None, None]
    B, C, H, W = y.shape
    yg = y.reshape(B, groups, C // groups, H, W)
    mean = jnp.mean(yg, axis=(2, 3, 4), keepdims=True)
    var = jnp.var(yg, axis=(2, 3, 4), keepdims=True)
    yg = (yg - mean) * jax.lax.rsqrt(var + eps)
    y = yg.reshape(B, C, H, W) * gamma[None, :, None, None] + beta[None, :, None, None]
    if scale_shift is not None:
        scale, shift = scale_shift
        y = y * (scale[:, :, None, None] + 1.0) + shift[:, :, None, None]
    return y * jax.nn.sigmoid(y)


if __name__ == "__main__":
    # small shapes consistent with the module
    B, dim, dim_out, groups = 2, 4, 32, 8
    H = W = 16

    key = jax.random.PRNGKey(0)
    kx, kw, kb, ks, kh = jax.random.split(key, 5)

    x = jax.random.normal(kx, (B, dim, H, W), dtype=jnp.float32)

    params = {
        "w": jax.random.normal(kw, (3, 3, dim, dim_out), dtype=jnp.float32) * 0.1,  # HWIO
        "b": jax.random.normal(kb, (dim_out,), dtype=jnp.float32) * 0.1,
        "gamma": jnp.ones((dim_out,), jnp.float32),
        "beta": jnp.zeros((dim_out,), jnp.float32),
    }
    scale = jax.random.normal(ks, (B, dim_out), dtype=jnp.float32) * 0.1
    shift = jax.random.normal(kh, (B, dim_out), dtype=jnp.float32) * 0.1

    # with scale_shift (FiLM) path
    out = jax.block_until_ready(block_forward(x, params, (scale, shift), groups=groups))
    ref = jax.block_until_ready(block_reference(x, params, (scale, shift), groups=groups))
    assert out.shape == (B, dim_out, H, W)
    assert jnp.allclose(out, ref, rtol=1e-4, atol=1e-4), (
        f"max abs err {jnp.max(jnp.abs(out - ref))}")

    # without scale_shift (optional in the PyTorch module)
    out2 = jax.block_until_ready(block_forward(x, params, None, groups=groups))
    ref2 = jax.block_until_ready(block_reference(x, params, None, groups=groups))
    assert jnp.allclose(out2, ref2, rtol=1e-4, atol=1e-4), (
        f"max abs err {jnp.max(jnp.abs(out2 - ref2))}")

    print("KERNEL_OK")
</pallas_src>

<mosaic_0001>
module attributes {stable_mosaic.version = 11 : i64} {
  func.func @_block_kernel(%arg0: i32, %arg1: i32, %arg2: memref<1x4x384xf32, #tpu.memory_space<vmem>>, %arg3: memref<9x32x4xf32, #tpu.memory_space<vmem>>, %arg4: memref<32x3xf32, #tpu.memory_space<vmem>>, %arg5: memref<32x32xf32, #tpu.memory_space<vmem>>, %arg6: memref<1x32x2xf32, #tpu.memory_space<vmem>>, %arg7: memref<3x256xf32, #tpu.memory_space<vmem>>, %arg8: memref<1x32x256xf32, #tpu.memory_space<vmem>>, %arg9: memref<32x1xf32, #tpu.memory_space<vmem>>) attributes {dimension_semantics = [#tpu.dimension_semantics<parallel>, #tpu.dimension_semantics<arbitrary>], iteration_bounds = array<i64: 2, 1>, scalar_prefetch = 0 : i64, scratch_operands = 1 : i64, tpu.core_type = #tpu.core_type<tc>, window_params = [{transform_indices = @transform_0, window_bounds = array<i64: 1, 4, 384>}, {pipeline_mode = #tpu.pipeline_mode<synchronous>, transform_indices = @transform_1, window_bounds = array<i64: 9, 32, 4>}, {pipeline_mode = #tpu.pipeline_mode<synchronous>, transform_indices = @transform_2, window_bounds = array<i64: 32, 3>}, {pipeline_mode = #tpu.pipeline_mode<synchronous>, transform_indices = @transform_3, window_bounds = array<i64: 32, 32>}, {transform_indices = @transform_4, window_bounds = array<i64: 1, 32, 2>}, {pipeline_mode = #tpu.pipeline_mode<synchronous>, transform_indices = @transform_5, window_bounds = array<i64: 3, 256>}, {transform_indices = @transform_6, window_bounds = array<i64: 1, 32, 256>}]} {
    %c256_i32 = arith.constant 256 : i32
    %0 = arith.muli %arg1, %c256_i32 : i32
    %1 = tpu.assume_multiple %0, 128 : i32
    %c0 = arith.constant 0 : index
    %c0_0 = arith.constant 0 : index
    %2 = arith.index_cast %1 : i32 to index
    %3 = vector.load %arg2[%c0, %c0_0, %2] : memref<1x4x384xf32, #tpu.memory_space<vmem>>, vector<1x4x384xf32>
    %4 = vector.shape_cast %3 : vector<1x4x384xf32> to vector<4x384xf32>
    %c0_1 = arith.constant 0 : index
    %5 = arith.index_cast %1 : i32 to index
    %6 = vector.load %arg7[%c0_1, %5] : memref<3x256xf32, #tpu.memory_space<vmem>>, vector<3x256xf32>
    %7 = vector.extract_strided_slice %6 {offsets = [0, 0], sizes = [1, 256], strides = [1, 1]} : vector<3x256xf32> to vector<1x256xf32>
    %8 = vector.extract_strided_slice %6 {offsets = [1, 0], sizes = [1, 256], strides = [1, 1]} : vector<3x256xf32> to vector<1x256xf32>
    %9 = vector.extract_strided_slice %6 {offsets = [2, 0], sizes = [1, 256], strides = [1, 1]} : vector<3x256xf32> to vector<1x256xf32>
    %10 = vector.extract_strided_slice %4 {offsets = [0, 0], sizes = [4, 256], strides = [1, 1]} : vector<4x384xf32> to vector<4x256xf32>
    %11 = vector.broadcast %7 : vector<1x256xf32> to vector<4x256xf32>
    %12 = arith.mulf %10, %11 : vector<4x256xf32>
    %c0_2 = arith.constant 0 : index
    %c0_3 = arith.constant 0 : index
    %c0_4 = arith.constant 0 : index
    %13 = vector.load %arg3[%c0_2, %c0_3, %c0_4] : memref<9x32x4xf32, #tpu.memory_space<vmem>>, vector<1x32x4xf32>
    %14 = vector.shape_cast %13 : vector<1x32x4xf32> to vector<32x4xf32>
    %cst = arith.constant dense<0.000000e+00> : vector<32x256xf32>
    %15 = tpu.matmul %14, %12, %cst {dimension_numbers = #tpu.dot_dimension_numbers<[1], [0], [0], [1], [0, 0, 1, 1], [], []>} : vector<32x4xf32>, vector<4x256xf32>, vector<32x256xf32> -> vector<32x256xf32>
    %16 = vector.extract_strided_slice %4 {offsets = [0, 1], sizes = [4, 256], strides = [1, 1]} : vector<4x384xf32> to vector<4x256xf32>
    %c1 = arith.constant 1 : index
    %c0_5 = arith.constant 0 : index
    %c0_6 = arith.constant 0 : index
    %17 = vector.load %arg3[%c1, %c0_5, %c0_6] : memref<9x32x4xf32, #tpu.memory_space<vmem>>, vector<1x32x4xf32>
    %18 = vector.shape_cast %17 : vector<1x32x4xf32> to vector<32x4xf32>
    %cst_7 = arith.constant dense<0.000000e+00> : vector<32x256xf32>
    %19 = tpu.matmul %18, %16, %cst_7 {dimension_numbers = #tpu.dot_dimension_numbers<[1], [0], [0], [1], [0, 0, 1, 1], [], []>} : vector<32x4xf32>, vector<4x256xf32>, vector<32x256xf32> -> vector<32x256xf32>
    %20 = arith.addf %15, %19 : vector<32x256xf32>
    %21 = vector.extract_strided_slice %4 {offsets = [0, 2], sizes = [4, 256], strides = [1, 1]} : vector<4x384xf32> to vector<4x256xf32>
    %22 = vector.broadcast %9 : vector<1x256xf32> to vector<4x256xf32>
    %23 = arith.mulf %21, %22 : vector<4x256xf32>
    %c2 = arith.constant 2 : index
    %c0_8 = arith.constant 0 : index
    %c0_9 = arith.constant 0 : index
    %24 = vector.load %arg3[%c2, %c0_8, %c0_9] : memref<9x32x4xf32, #tpu.memory_space<vmem>>, vector<1x32x4xf32>
    %25 = vector.shape_cast %24 : vector<1x32x4xf32> to vector<32x4xf32>
    %cst_10 = arith.constant dense<0.000000e+00> : vector<32x256xf32>
    %26 = tpu.matmul %25, %23, %cst_10 {dimension_numbers = #tpu.dot_dimension_numbers<[1], [0], [0], [1], [0, 0, 1, 1], [], []>} : vector<32x4xf32>, vector<4x256xf32>, vector<32x256xf32> -> vector<32x256xf32>
    %27 = arith.addf %20, %26 : vector<32x256xf32>
    %28 = vector.extract_strided_slice %4 {offsets = [0, 16], sizes = [4, 256], strides = [1, 1]} : vector<4x384xf32> to vector<4x256xf32>
    %29 = vector.broadcast %7 : vector<1x256xf32> to vector<4x256xf32>
    %30 = arith.mulf %28, %29 : vector<4x256xf32>
    %c3 = arith.constant 3 : index
    %c0_11 = arith.constant 0 : index
    %c0_12 = arith.constant 0 : index
    %31 = vector.load %arg3[%c3, %c0_11, %c0_12] : memref<9x32x4xf32, #tpu.memory_space<vmem>>, vector<1x32x4xf32>
    %32 = vector.shape_cast %31 : vector<1x32x4xf32> to vector<32x4xf32>
    %cst_13 = arith.constant dense<0.000000e+00> : vector<32x256xf32>
    %33 = tpu.matmul %32, %30, %cst_13 {dimension_numbers = #tpu.dot_dimension_numbers<[1], [0], [0], [1], [0, 0, 1, 1], [], []>} : vector<32x4xf32>, vector<4x256xf32>, vector<32x256xf32> -> vector<32x256xf32>
    %34 = arith.addf %27, %33 : vector<32x256xf32>
    %35 = vector.extract_strided_slice %4 {offsets = [0, 17], sizes = [4, 256], strides = [1, 1]} : vector<4x384xf32> to vector<4x256xf32>
    %c4 = arith.constant 4 : index
    %c0_14 = arith.constant 0 : index
    %c0_15 = arith.constant 0 : index
    %36 = vector.load %arg3[%c4, %c0_14, %c0_15] : memref<9x32x4xf32, #tpu.memory_space<vmem>>, vector<1x32x4xf32>
    %37 = vector.shape_cast %36 : vector<1x32x4xf32> to vector<32x4xf32>
    %cst_16 = arith.constant dense<0.000000e+00> : vector<32x256xf32>
    %38 = tpu.matmul %37, %35, %cst_16 {dimension_numbers = #tpu.dot_dimension_numbers<[1], [0], [0], [1], [0, 0, 1, 1], [], []>} : vector<32x4xf32>, vector<4x256xf32>, vector<32x256xf32> -> vector<32x256xf32>
    %39 = arith.addf %34, %38 : vector<32x256xf32>
    %40 = vector.extract_strided_slice %4 {offsets = [0, 18], sizes = [4, 256], strides = [1, 1]} : vector<4x384xf32> to vector<4x256xf32>
    %41 = vector.broadcast %9 : vector<1x256xf32> to vector<4x256xf32>
    %42 = arith.mulf %40, %41 : vector<4x256xf32>
    %c5 = arith.constant 5 : index
    %c0_17 = arith.constant 0 : index
    %c0_18 = arith.constant 0 : index
    %43 = vector.load %arg3[%c5, %c0_17, %c0_18] : memref<9x32x4xf32, #tpu.memory_space<vmem>>, vector<1x32x4xf32>
    %44 = vector.shape_cast %43 : vector<1x32x4xf32> to vector<32x4xf32>
    %cst_19 = arith.constant dense<0.000000e+00> : vector<32x256xf32>
    %45 = tpu.matmul %44, %42, %cst_19 {dimension_numbers = #tpu.dot_dimension_numbers<[1], [0], [0], [1], [0, 0, 1, 1], [], []>} : vector<32x4xf32>, vector<4x256xf32>, vector<32x256xf32> -> vector<32x256xf32>
    %46 = arith.addf %39, %45 : vector<32x256xf32>
    %47 = vector.extract_strided_slice %4 {offsets = [0, 32], sizes = [4, 256], strides = [1, 1]} : vector<4x384xf32> to vector<4x256xf32>
    %48 = vector.broadcast %7 : vector<1x256xf32> to vector<4x256xf32>
    %49 = arith.mulf %47, %48 : vector<4x256xf32>
    %c6 = arith.constant 6 : index
    %c0_20 = arith.constant 0 : index
    %c0_21 = arith.constant 0 : index
    %50 = vector.load %arg3[%c6, %c0_20, %c0_21] : memref<9x32x4xf32, #tpu.memory_space<vmem>>, vector<1x32x4xf32>
    %51 = vector.shape_cast %50 : vector<1x32x4xf32> to vector<32x4xf32>
    %cst_22 = arith.constant dense<0.000000e+00> : vector<32x256xf32>
    %52 = tpu.matmul %51, %49, %cst_22 {dimension_numbers = #tpu.dot_dimension_numbers<[1], [0], [0], [1], [0, 0, 1, 1], [], []>} : vector<32x4xf32>, vector<4x256xf32>, vector<32x256xf32> -> vector<32x256xf32>
    %53 = arith.addf %46, %52 : vector<32x256xf32>
    %54 = vector.extract_strided_slice %4 {offsets = [0, 33], sizes = [4, 256], strides = [1, 1]} : vector<4x384xf32> to vector<4x256xf32>
    %c7 = arith.constant 7 : index
    %c0_23 = arith.constant 0 : index
    %c0_24 = arith.constant 0 : index
    %55 = vector.load %arg3[%c7, %c0_23, %c0_24] : memref<9x32x4xf32, #tpu.memory_space<vmem>>, vector<1x32x4xf32>
    %56 = vector.shape_cast %55 : vector<1x32x4xf32> to vector<32x4xf32>
    %cst_25 = arith.constant dense<0.000000e+00> : vector<32x256xf32>
    %57 = tpu.matmul %56, %54, %cst_25 {dimension_numbers = #tpu.dot_dimension_numbers<[1], [0], [0], [1], [0, 0, 1, 1], [], []>} : vector<32x4xf32>, vector<4x256xf32>, vector<32x256xf32> -> vector<32x256xf32>
    %58 = arith.addf %53, %57 : vector<32x256xf32>
    %59 = vector.extract_strided_slice %4 {offsets = [0, 34], sizes = [4, 256], strides = [1, 1]} : vector<4x384xf32> to vector<4x256xf32>
    %60 = vector.broadcast %9 : vector<1x256xf32> to vector<4x256xf32>
    %61 = arith.mulf %59, %60 : vector<4x256xf32>
    %c8 = arith.constant 8 : index
    %c0_26 = arith.constant 0 : index
    %c0_27 = arith.constant 0 : index
    %62 = vector.load %arg3[%c8, %c0_26, %c0_27] : memref<9x32x4xf32, #tpu.memory_space<vmem>>, vector<1x32x4xf32>
    %63 = vector.shape_cast %62 : vector<1x32x4xf32> to vector<32x4xf32>
    %cst_28 = arith.constant dense<0.000000e+00> : vector<32x256xf32>
    %64 = tpu.matmul %63, %61, %cst_28 {dimension_numbers = #tpu.dot_dimension_numbers<[1], [0], [0], [1], [0, 0, 1, 1], [], []>} : vector<32x4xf32>, vector<4x256xf32>, vector<32x256xf32> -> vector<32x256xf32>
    %65 = arith.addf %58, %64 : vector<32x256xf32>
    %c0_29 = arith.constant 0 : index
    %c0_30 = arith.constant 0 : index
    %66 = vector.load %arg4[%c0_29, %c0_30] : memref<32x3xf32, #tpu.memory_space<vmem>>, vector<32x1xf32>
    %67 = vector.broadcast %66 : vector<32x1xf32> to vector<32x256xf32>
    %68 = arith.addf %65, %67 : vector<32x256xf32>
    %c0_31 = arith.constant 0 : index
    %c0_32 = arith.constant 0 : index
    %69 = arith.index_cast %1 : i32 to index
    %70 = vector.load %arg8[%c0_31, %c0_32, %69] : memref<1x32x256xf32, #tpu.memory_space<vmem>>, vector<1x32x256xf32>
    %71 = vector.shape_cast %70 : vector<1x32x256xf32> to vector<32x256xf32>
    %72 = vector.shape_cast %68 : vector<32x256xf32> to vector<1x32x256xf32>
    tpu.vector_store %arg8[%c0_31, %c0_32, %69], %72 {strides = array<i32>} : memref<1x32x256xf32, #tpu.memory_space<vmem>>, vector<1x32x256xf32>,
    %73 = vector.broadcast %8 : vector<1x256xf32> to vector<32x256xf32>
    %74 = arith.mulf %68, %73 : vector<32x256xf32>
    %cst_33 = arith.constant dense<0.000000e+00> : vector<32xf32>
    %75 = vector.multi_reduction <add>, %74, %cst_33 [1] : vector<32x256xf32> to vector<32xf32>
    %76 = vector.shape_cast %75 : vector<32xf32> to vector<32x1xf32>
    %c0_i32 = arith.constant 0 : i32
    %77 = arith.cmpi eq, %arg1, %c0_i32 : i32
    %78 = arith.extui %77 : i1 to i32
    %c0_i32_34 = arith.constant 0 : i32
    %79 = arith.cmpi ne, %78, %c0_i32_34 : i32
    scf.if %79 {
      %c0_39 = arith.constant 0 : index
      %c0_40 = arith.constant 0 : index
      %86 = vector.load %arg9[%c0_39, %c0_40] : memref<32x1xf32, #tpu.memory_space<vmem>>, vector<32x1xf32>
      tpu.vector_store %arg9[%c0_39, %c0_40], %76 {strides = array<i32>} : memref<32x1xf32, #tpu.memory_space<vmem>>, vector<32x1xf32>,
    } else {
    }
    %c0_i32_35 = arith.constant 0 : i32
    %80 = arith.cmpi sgt, %arg1, %c0_i32_35 : i32
    %81 = arith.extui %80 : i1 to i32
    %c0_i32_36 = arith.constant 0 : i32
    %82 = arith.cmpi ne, %81, %c0_i32_36 : i32
    scf.if %82 {
      %c0_39 = arith.constant 0 : index
      %c0_40 = arith.constant 0 : index
      %86 = vector.load %arg9[%c0_39, %c0_40] : memref<32x1xf32, #tpu.memory_space<vmem>>, vector<32x1xf32>
      %87 = arith.addf %86, %76 : vector<32x1xf32>
      %c0_41 = arith.constant 0 : index
      %c0_42 = arith.constant 0 : index
      %88 = vector.load %arg9[%c0_41, %c0_42] : memref<32x1xf32, #tpu.memory_space<vmem>>, vector<32x1xf32>
      tpu.vector_store %arg9[%c0_41, %c0_42], %87 {strides = array<i32>} : memref<32x1xf32, #tpu.memory_space<vmem>>, vector<32x1xf32>,
    } else {
    }
    %c0_i32_37 = arith.constant 0 : i32
    %83 = arith.cmpi eq, %arg1, %c0_i32_37 : i32
    %84 = arith.extui %83 : i1 to i32
    %c0_i32_38 = arith.constant 0 : i32
    %85 = arith.cmpi ne, %84, %c0_i32_38 : i32
    scf.if %85 {
      %c0_39 = arith.constant 0 : index
      %c0_40 = arith.constant 0 : index
      %86 = vector.load %arg5[%c0_39, %c0_40] : memref<32x32xf32, #tpu.memory_space<vmem>>, vector<32x32xf32>
      %c0_41 = arith.constant 0 : index
      %c0_42 = arith.constant 0 : index
      %87 = vector.load %arg9[%c0_41, %c0_42] : memref<32x1xf32, #tpu.memory_space<vmem>>, vector<32x1xf32>
      %cst_43 = arith.constant dense<0.000000e+00> : vector<32x1xf32>
      %88 = tpu.matmul %86, %87, %cst_43 {dimension_numbers = #tpu.dot_dimension_numbers<[1], [0], [0], [1], [0, 0, 1, 1], [], []>} : vector<32x32xf32>, vector<32x1xf32>, vector<32x1xf32> -> vector<32x1xf32>
      %cst_44 = arith.constant 0.000000e+00 : f32
      %89 = vector.broadcast %cst_44 : f32 to vector<32x1xf32>
      %c0_i32_45 = arith.constant 0 : i32
      %c256_i32_46 = arith.constant 256 : i32
      %90 = arith.muli %c0_i32_45, %c256_i32_46 : i32
      %91 = tpu.assume_multiple %90, 128 : i32
      %c0_47 = arith.constant 0 : index
      %c0_48 = arith.constant 0 : index
      %92 = arith.index_cast %91 : i32 to index
      %93 = vector.load %arg8[%c0_47, %c0_48, %92] : memref<1x32x256xf32, #tpu.memory_space<vmem>>, vector<1x32x256xf32>
      %94 = vector.shape_cast %93 : vector<1x32x256xf32> to vector<32x256xf32>
      %c1_49 = arith.constant 1 : index
      %95 = arith.index_cast %91 : i32 to index
      %96 = vector.load %arg7[%c1_49, %95] : memref<3x256xf32, #tpu.memory_space<vmem>>, vector<1x256xf32>
      %97 = vector.broadcast %88 : vector<32x1xf32> to vector<32x256xf32>
      %98 = arith.subf %94, %97 : vector<32x256xf32>
      %99 = vector.broadcast %96 : vector<1x256xf32> to vector<32x256xf32>
      %100 = arith.mulf %98, %99 : vector<32x256xf32>
      %101 = arith.mulf %100, %100 : vector<32x256xf32>
      %cst_50 = arith.constant dense<0.000000e+00> : vector<32xf32>
      %102 = vector.multi_reduction <add>, %101, %cst_50 [1] : vector<32x256xf32> to vector<32xf32>
      %103 = vector.shape_cast %102 : vector<32xf32> to vector<32x1xf32>
      %104 = arith.addf %89, %103 : vector<32x1xf32>
      %c1_i32 = arith.constant 1 : i32
      %c0_51 = arith.constant 0 : index
      %c0_52 = arith.constant 0 : index
      %105 = vector.load %arg5[%c0_51, %c0_52] : memref<32x32xf32, #tpu.memory_space<vmem>>, vector<32x32xf32>
      %cst_53 = arith.constant dense<0.000000e+00> : vector<32x1xf32>
      %106 = tpu.matmul %105, %104, %cst_53 {dimension_numbers = #tpu.dot_dimension_numbers<[1], [0], [0], [1], [0, 0, 1, 1], [], []>} : vector<32x32xf32>, vector<32x1xf32>, vector<32x1xf32> -> vector<32x1xf32>
      %cst_54 = arith.constant 9.99999974E-6 : f32
      %107 = vector.broadcast %cst_54 : f32 to vector<32x1xf32>
      %108 = arith.addf %106, %107 : vector<32x1xf32>
      %109 = math.rsqrt %108 : vector<32x1xf32>
      %c0_55 = arith.constant 0 : index
      %c1_56 = arith.constant 1 : index
      %110 = vector.load %arg4[%c0_55, %c1_56] : memref<32x3xf32, #tpu.memory_space<vmem>>, vector<32x1xf32>
      %c0_57 = arith.constant 0 : index
      %c2_58 = arith.constant 2 : index
      %111 = vector.load %arg4[%c0_57, %c2_58] : memref<32x3xf32, #tpu.memory_space<vmem>>, vector<32x1xf32>
      %c0_59 = arith.constant 0 : index
      %c0_60 = arith.constant 0 : index
      %c0_61 = arith.constant 0 : index
      %112 = vector.load %arg6[%c0_59, %c0_60, %c0_61] : memref<1x32x2xf32, #tpu.memory_space<vmem>>, vector<1x32x1xf32>
      %113 = vector.shape_cast %112 : vector<1x32x1xf32> to vector<32x1xf32>
      %c0_62 = arith.constant 0 : index
      %c0_63 = arith.constant 0 : index
      %c1_64 = arith.constant 1 : index
      %114 = vector.load %arg6[%c0_62, %c0_63, %c1_64] : memref<1x32x2xf32, #tpu.memory_space<vmem>>, vector<1x32x1xf32>
      %115 = vector.shape_cast %114 : vector<1x32x1xf32> to vector<32x1xf32>
      %116 = arith.mulf %110, %109 : vector<32x1xf32>
      %cst_65 = arith.constant 1.000000e+00 : f32
      %117 = vector.broadcast %cst_65 : f32 to vector<32x1xf32>
      %118 = arith.addf %113, %117 : vector<32x1xf32>
      %119 = arith.mulf %116, %118 : vector<32x1xf32>
      %120 = arith.mulf %110, %109 : vector<32x1xf32>
      %121 = arith.mulf %120, %88 : vector<32x1xf32>
      %122 = arith.subf %111, %121 : vector<32x1xf32>
      %cst_66 = arith.constant 1.000000e+00 : f32
      %123 = vector.broadcast %cst_66 : f32 to vector<32x1xf32>
      %124 = arith.addf %113, %123 : vector<32x1xf32>
      %125 = arith.mulf %122, %124 : vector<32x1xf32>
      %126 = arith.addf %125, %115 : vector<32x1xf32>
      %c0_i32_67 = arith.constant 0 : i32
      %c256_i32_68 = arith.constant 256 : i32
      %127 = arith.muli %c0_i32_67, %c256_i32_68 : i32
      %128 = tpu.assume_multiple %127, 128 : i32
      %c0_69 = arith.constant 0 : index
      %c0_70 = arith.constant 0 : index
      %129 = arith.index_cast %128 : i32 to index
      %130 = vector.load %arg8[%c0_69, %c0_70, %129] : memref<1x32x256xf32, #tpu.memory_space<vmem>>, vector<1x32x256xf32>
      %131 = vector.shape_cast %130 : vector<1x32x256xf32> to vector<32x256xf32>
      %132 = vector.broadcast %119 : vector<32x1xf32> to vector<32x256xf32>
      %133 = arith.mulf %131, %132 : vector<32x256xf32>
      %134 = vector.broadcast %126 : vector<32x1xf32> to vector<32x256xf32>
      %135 = arith.addf %133, %134 : vector<32x256xf32>
      %136 = arith.negf %135 : vector<32x256xf32>
      %137 = math.exp %136 : vector<32x256xf32>
      %cst_71 = arith.constant 1.000000e+00 : f32
      %138 = vector.broadcast %cst_71 : f32 to vector<32x256xf32>
      %139 = arith.addf %138, %137 : vector<32x256xf32>
      %140 = arith.divf %138, %139 : vector<32x256xf32>
      %141 = arith.mulf %135, %140 : vector<32x256xf32>
      %c0_72 = arith.constant 0 : index
      %c0_73 = arith.constant 0 : index
      %142 = arith.index_cast %128 : i32 to index
      %143 = vector.load %arg8[%c0_72, %c0_73, %142] : memref<1x32x256xf32, #tpu.memory_space<vmem>>, vector<1x32x256xf32>
      %144 = vector.shape_cast %143 : vector<1x32x256xf32> to vector<32x256xf32>
      %145 = vector.shape_cast %141 : vector<32x256xf32> to vector<1x32x256xf32>
      tpu.vector_store %arg8[%c0_72, %c0_73, %142], %145 {strides = array<i32>} : memref<1x32x256xf32, #tpu.memory_space<vmem>>, vector<1x32x256xf32>,
      %c1_i32_74 = arith.constant 1 : i32
    } else {
    }
    return
  }
  func.func @transform_0(%arg0: i32, %arg1: i32) -> (i32, i32, i32) {
    %c0_i32 = arith.constant 0 : i32
    %c0_i32_0 = arith.constant 0 : i32
    %c0_i32_1 = arith.constant 0 : i32
    return %arg0, %c0_i32, %c0_i32_0 : i32, i32, i32
  }
  func.func @transform_1(%arg0: i32, %arg1: i32) -> (i32, i32, i32) {
    %c0_i32 = arith.constant 0 : i32
    %c0_i32_0 = arith.constant 0 : i32
    %c0_i32_1 = arith.constant 0 : i32
    %c0_i32_2 = arith.constant 0 : i32
    return %c0_i32, %c0_i32_0, %c0_i32_1 : i32, i32, i32
  }
  func.func @transform_2(%arg0: i32, %arg1: i32) -> (i32, i32) {
    %c0_i32 = arith.constant 0 : i32
    %c0_i32_0 = arith.constant 0 : i32
    %c0_i32_1 = arith.constant 0 : i32
    return %c0_i32, %c0_i32_0 : i32, i32
  }
  func.func @transform_3(%arg0: i32, %arg1: i32) -> (i32, i32) {
    %c0_i32 = arith.constant 0 : i32
    %c0_i32_0 = arith.constant 0 : i32
    %c0_i32_1 = arith.constant 0 : i32
    return %c0_i32, %c0_i32_0 : i32, i32
  }
  func.func @transform_4(%arg0: i32, %arg1: i32) -> (i32, i32, i32) {
    %c0_i32 = arith.constant 0 : i32
    %c0_i32_0 = arith.constant 0 : i32
    %c0_i32_1 = arith.constant 0 : i32
    return %arg0, %c0_i32, %c0_i32_0 : i32, i32, i32
  }
  func.func @transform_5(%arg0: i32, %arg1: i32) -> (i32, i32) {
    %c0_i32 = arith.constant 0 : i32
    %c0_i32_0 = arith.constant 0 : i32
    %c0_i32_1 = arith.constant 0 : i32
    return %c0_i32, %c0_i32_0 : i32, i32
  }
  func.func @transform_6(%arg0: i32, %arg1: i32) -> (i32, i32, i32) {
    %c0_i32 = arith.constant 0 : i32
    %c0_i32_0 = arith.constant 0 : i32
    %c0_i32_1 = arith.constant 0 : i32
    return %arg0, %c0_i32, %c0_i32_0 : i32, i32, i32
  }
}

</mosaic_0001>

<llo_original>
// kernel: tpu_custom_call.1
$region0: #{tpu_custom_call.1}
  #allocation0 [shape = 'u32[]', space=smem, size = 0x4, offset = 0x4, fixed_abs, tag = 'smem constant byte address 0x4 - core index']
  #allocation1 [shape = 'u32[144,128]{1,0:T(1,128)}', space=vmem, size = 0x12000, scoped, tag = 'internal scratch']
  #allocation2 [shape = 'f32[32,1]{1,0:T(8,128)}', space=vmem, size = 0x4000, scoped, tag = 'scratch operand']
  %s0 = inlined_call_operand.vmem [shape: f32[2,4,384], index: 0, kind: input, shape index: {}]
  %s1 = inlined_call_operand.vmem [shape: f32[9,32,4], index: 1, kind: input, shape index: {}]
  %s2 = inlined_call_operand.vmem [shape: f32[32,3], index: 2, kind: input, shape index: {}]
  %s3 = inlined_call_operand.vmem [shape: f32[32,32], index: 3, kind: input, shape index: {}]
  %s4 = inlined_call_operand.vmem [shape: f32[2,32,2], index: 4, kind: input, shape index: {}]
  %s5 = inlined_call_operand.vmem [shape: f32[3,256], index: 5, kind: input, shape index: {}]
  %s6 = inlined_call_operand.hbm [shape: f32[2,32,256], index: 6, kind: output, shape index: {}]
  %s7 = sld [smem:[#allocation0]]
  $region69: #{tpu_custom_call.1} parent=0
    _
  %s9 = ssub.s32 1, %s7
  %s10 = scalar_select 0, %s9, %s7
  $region1: #{tpu_custom_call.1} parent=0
    #allocation3 [shape = 'u8[65536]{0}', space=vmem, size = 0x10000, scoped, tag = 'output window, operand 0']
    #allocation4 [shape = 's32[2]{0}', space=sflag, size = 0x8, scoped, tag = 'scoped memory for tpu_custom_call.1']
    %11 = vsyncpa [#allocation4], 0
    %s12 = scalar_lea.sflag [#allocation4], 1
    %13 = vsyncpa %s12, 0
    loop: start=0, step=1, limit=4
    $region2: #{tpu_custom_call.1} parent=1 // loop_pre_header
      _
    $region3: #{tpu_custom_call.1} parent=1 // loop_header
      %s15 = sphi 0, %s19
      %p16 = scmp.ge.s32.totalorder %s15, 4
      %s22 = sphi 0, %s34
      %s23 = sphi 0, %s30
      %s24 = sphi 0, %s22
      %s25 = sphi 0, %s23
      %s26 = sphi 0, %s24
      %s27 = sphi 0, %s25
      %s37 = sphi 0, %s39
      %s40 = sphi 0, %s37
      %s41 = sphi 0, %s40
      %s57 = sphi 0, %s41
      %s61 = sphi 0, %s61
      %s63 = sphi 0, %s61
      %s64 = sphi 0, %s63
      %s78 = sphi 0, %s64
      %s82 = sphi 0, %s82
      %s84 = sphi 0, %s82
      %s85 = sphi 0, %s84
      %s99 = sphi 0, %s85
      %s103 = sphi 0, %s103
      %s105 = sphi 0, %s103
      %s106 = sphi 0, %s105
      %s120 = sphi 0, %s106
      %s126 = sphi 0, %s128
      %s129 = sphi 0, %s126
      %s130 = sphi 0, %s129
      %s146 = sphi 0, %s130
      %s150 = sphi 0, %s150
      %s152 = sphi 0, %s150
      %s153 = sphi 0, %s152
      %s167 = sphi 0, %s153
      %s173 = sphi 0, %s175
      %s176 = sphi 0, %s173
      %s177 = sphi 0, %s176
      %s193 = sphi 0, %s177
    $region4: #{tpu_custom_call.1} parent=1 // loop_header_branch
      %18 = sbr.rel (%p16) target = $region8
    $region5: #{tpu_custom_call.1} parent=1 // loop_body
      %s20 = ssub.s32 %s15, 1
      %s21 = ssub.s32 %s15, 2
      %s28 = sadd.s32 1, %s23
      %p29 = scmp.ge.s32.totalorder %s28, 1
      %s30 = scalar_select %p29, 0, %s28
      %s31 = sadd.s32 1, %s22
      %s32 = scalar_select %p29, %s31, %s22
      %p33 = scmp.ge.s32.totalorder %s32, 2
      %s34 = scalar_select %p33, 0, %s32
      %s35 = ssub.s32 %s22, %s34
      %p36 = scmp.eq.s32.totalorder %s35, 0
      %s38 = sadd.s32 %s37, 1
      %s39 = scalar_select %p36, %s37, %s38
      %p42 = pneg %p36
      %p43 = scmp.eq.s32.totalorder %s15, 1
      %p44 = por %p42, %p43
      %p45 = scmp.ne.s32.totalorder %s37, %s40
      %p46 = scmp.eq.s32.totalorder %s15, 0
      %p47 = por %p45, %p46
      %p48 = scmp.ne.s32.totalorder %s37, %s40
      %p49 = scmp.eq.s32.totalorder %s20, 1
      %p50 = por %p48, %p49
      %p51 = scmp.ne.s32.totalorder %s40, %s41
      %p52 = scmp.eq.s32.totalorder %s20, 0
      %p53 = por %p51, %p52
      %p54 = scmp.ne.s32.totalorder %s40, %s41
      %p55 = scmp.eq.s32.totalorder %s21, 1
      %p56 = por %p54, %p55
      %p58 = scmp.ne.s32.totalorder %s41, %s57
      %p59 = scmp.eq.s32.totalorder %s21, 0
      %p60 = por %p58, %p59
      %s62 = sadd.s32 %s61, 1
      %p65 = scmp.eq.s32.totalorder %s15, 1
      %p66 = scmp.ne.s32.totalorder %s61, %s63
      %p67 = scmp.eq.s32.totalorder %s15, 0
      %p68 = por %p66, %p67
      %p69 = scmp.ne.s32.totalorder %s61, %s63
      %p70 = scmp.eq.s32.totalorder %s20, 1
      %p71 = por %p69, %p70
      %p72 = scmp.ne.s32.totalorder %s63, %s64
      %p73 = scmp.eq.s32.totalorder %s20, 0
      %p74 = por %p72, %p73
      %p75 = scmp.ne.s32.totalorder %s63, %s64
      %p76 = scmp.eq.s32.totalorder %s21, 1
      %p77 = por %p75, %p76
      %p79 = scmp.ne.s32.totalorder %s64, %s78
      %p80 = scmp.eq.s32.totalorder %s21, 0
      %p81 = por %p79, %p80
      %s83 = sadd.s32 %s82, 1
      %p86 = scmp.eq.s32.totalorder %s15, 1
      %p87 = scmp.ne.s32.totalorder %s82, %s84
      %p88 = scmp.eq.s32.totalorder %s15, 0
      %p89 = por %p87, %p88
      %p90 = scmp.ne.s32.totalorder %s82, %s84
      %p91 = scmp.eq.s32.totalorder %s20, 1
      %p92 = por %p90, %p91
      %p93 = scmp.ne.s32.totalorder %s84, %s85
      %p94 = scmp.eq.s32.totalorder %s20, 0
      %p95 = por %p93, %p94
      %p96 = scmp.ne.s32.totalorder %s84, %s85
      %p97 = scmp.eq.s32.totalorder %s21, 1
      %p98 = por %p96, %p97
      %p100 = scmp.ne.s32.totalorder %s85, %s99
      %p101 = scmp.eq.s32.totalorder %s21, 0
      %p102 = por %p100, %p101
      %s104 = sadd.s32 %s103, 1
      %p107 = scmp.eq.s32.totalorder %s15, 1
      %p108 = scmp.ne.s32.totalorder %s103, %s105
      %p109 = scmp.eq.s32.totalorder %s15, 0
      %p110 = por %p108, %p109
      %p111 = scmp.ne.s32.totalorder %s103, %s105
      %p112 = scmp.eq.s32.totalorder %s20, 1
      %p113 = por %p111, %p112
      %p114 = scmp.ne.s32.totalorder %s105, %s106
      %p115 = scmp.eq.s32.totalorder %s20, 0
      %p116 = por %p114, %p115
      %p117 = scmp.ne.s32.totalorder %s105, %s106
      %p118 = scmp.eq.s32.totalorder %s21, 1
      %p119 = por %p117, %p118
      %p121 = scmp.ne.s32.totalorder %s106, %s120
      %p122 = scmp.eq.s32.totalorder %s21, 0
      %p123 = por %p121, %p122
      %s124 = ssub.s32 %s22, %s34
      %p125 = scmp.eq.s32.totalorder %s124, 0
      %s127 = sadd.s32 %s126, 1
      %s128 = scalar_select %p125, %s126, %s127
      %p131 = pneg %p125
      %p132 = scmp.eq.s32.totalorder %s15, 1
      %p133 = por %p131, %p132
      %p134 = scmp.ne.s32.totalorder %s126, %s129
      %p135 = scmp.eq.s32.totalorder %s15, 0
      %p136 = por %p134, %p135
      %p137 = scmp.ne.s32.totalorder %s126, %s129
      %p138 = scmp.eq.s32.totalorder %s20, 1
      %p139 = por %p137, %p138
      %p140 = scmp.ne.s32.totalorder %s129, %s130
      %p141 = scmp.eq.s32.totalorder %s20, 0
      %p142 = por %p140, %p141
      %p143 = scmp.ne.s32.totalorder %s129, %s130
      %p144 = scmp.eq.s32.totalorder %s21, 1
      %p145 = por %p143, %p144
      %p147 = scmp.ne.s32.totalorder %s130, %s146
      %p148 = scmp.eq.s32.totalorder %s21, 0
      %p149 = por %p147, %p148
      %s151 = sadd.s32 %s150, 1
      %p154 = scmp.eq.s32.totalorder %s15, 1
      %p155 = scmp.ne.s32.totalorder %s150, %s152
      %p156 = scmp.eq.s32.totalorder %s15, 0
      %p157 = por %p155, %p156
      %p158 = scmp.ne.s32.totalorder %s150, %s152
      %p159 = scmp.eq.s32.totalorder %s20, 1
      %p160 = por %p158, %p159
      %p161 = scmp.ne.s32.totalorder %s152, %s153
      %p162 = scmp.eq.s32.totalorder %s20, 0
      %p163 = por %p161, %p162
      %p164 = scmp.ne.s32.totalorder %s152, %s153
      %p165 = scmp.eq.s32.totalorder %s21, 1
      %p166 = por %p164, %p165
      %p168 = scmp.ne.s32.totalorder %s153, %s167
      %p169 = scmp.eq.s32.totalorder %s21, 0
      %p170 = por %p168, %p169
      %s171 = ssub.s32 %s22, %s34
      %p172 = scmp.eq.s32.totalorder %s171, 0
      %s174 = sadd.s32 %s173, 1
      %s175 = scalar_select %p172, %s173, %s174
      %p178 = pneg %p172
      %p179 = scmp.eq.s32.totalorder %s15, 1
      %p180 = por %p178, %p179
      %p181 = scmp.ne.s32.totalorder %s173, %s176
      %p182 = scmp.eq.s32.totalorder %s15, 0
      %p183 = por %p181, %p182
      %p184 = scmp.ne.s32.totalorder %s173, %s176
      %p185 = scmp.eq.s32.totalorder %s20, 1
      %p186 = por %p184, %p185
      %p187 = scmp.ne.s32.totalorder %s176, %s177
      %p188 = scmp.eq.s32.totalorder %s20, 0
      %p189 = por %p187, %p188
      %p190 = scmp.ne.s32.totalorder %s176, %s177
      %p191 = scmp.eq.s32.totalorder %s21, 1
      %p192 = por %p190, %p191
      %p194 = scmp.ne.s32.totalorder %s177, %s193
      %p195 = scmp.eq.s32.totalorder %s21, 0
      %p196 = por %p194, %p195
      %p197 = scmp.le.s32.totalorder 1, %s15
      %p198 = scmp.lt.s32.totalorder %s15, 3
      %p199 = pnand %p197, %p198
      %p200 = pneg %p199
      // Predicated region
      $region9: #{tpu_custom_call.1} parent=5 // pred_check
        _
      $region10: #{tpu_custom_call.1} parent=5 // pred_check_branch
        %202 = sbr.rel (%p199) target = $region12
      $region11: #{tpu_custom_call.1} parent=5 // pred_region
        %s203 = ssub.s32 %s15, 1
        // Predicated region
        $region13: #{tpu_custom_call.1} parent=11 // pred_check
          %p204 = pneg %p74
        $region14: #{tpu_custom_call.1} parent=11 // pred_check_branch
          %206 = sbr.rel (%p204) target = $region16
        $region15: #{tpu_custom_call.1} parent=11 // pred_region
          _
        $region16: #{tpu_custom_call.1} parent=11 // pred_fallthru
          _
        // Predicated region
        $region17: #{tpu_custom_call.1} parent=11 // pred_check
          %p207 = pneg %p95
        $region18: #{tpu_custom_call.1} parent=11 // pred_check_branch
          %209 = sbr.rel (%p207) target = $region20
        $region19: #{tpu_custom_call.1} parent=11 // pred_region
          _
        $region20: #{tpu_custom_call.1} parent=11 // pred_fallthru
          _
        // Predicated region
        $region21: #{tpu_custom_call.1} parent=11 // pred_check
          %p210 = pneg %p116
        $region22: #{tpu_custom_call.1} parent=11 // pred_check_branch
          %212 = sbr.rel (%p210) target = $region24
        $region23: #{tpu_custom_call.1} parent=11 // pred_region
          _
        $region24: #{tpu_custom_call.1} parent=11 // pred_fallthru
          _
        // Predicated region
        $region25: #{tpu_custom_call.1} parent=11 // pred_check
          %p213 = pneg %p163
        $region26: #{tpu_custom_call.1} parent=11 // pred_check_branch
          %215 = sbr.rel (%p213) target = $region28
        $region27: #{tpu_custom_call.1} parent=11 // pred_region
          _
        $region28: #{tpu_custom_call.1} parent=11 // pred_fallthru
          _
      $region12: #{tpu_custom_call.1} parent=5 // pred_fallthru
        _
      %p216 = scmp.lt.s32.totalorder %s15, 2
      // Predicated region
      $region29: #{tpu_custom_call.1} parent=5 // pred_check
        %p217 = pneg %p216
      $region30: #{tpu_custom_call.1} parent=5 // pred_check_branch
        %219 = sbr.rel (%p217) target = $region32
      $region31: #{tpu_custom_call.1} parent=5 // pred_region
        // Predicated region
        $region33: #{tpu_custom_call.1} parent=31 // pred_check
          %p220 = pneg %p47
        $region34: #{tpu_custom_call.1} parent=31 // pred_check_branch
          %222 = sbr.rel (%p220) target = $region36
        $region35: #{tpu_custom_call.1} parent=31 // pred_region
          %p223 = scmp.lt.s32.totalorder %s22, 1
          %s224 = scalar_select %p223, %s22, 1
          %s225 = smul.addr %s224, 3
          %s226 = smul.addr %s225, 4
          %s227 = scalar_lea.vmem %s0, %s226
        $region36: #{tpu_custom_call.1} parent=31 // pred_fallthru
          _
        // Predicated region
        $region37: #{tpu_custom_call.1} parent=31 // pred_check
          %p228 = pneg %p136
        $region38: #{tpu_custom_call.1} parent=31 // pred_check_branch
          %230 = sbr.rel (%p228) target = $region40
        $region39: #{tpu_custom_call.1} parent=31 // pred_region
          %p231 = scmp.lt.s32.totalorder %s22, 1
          %s232 = scalar_select %p231, %s22, 1
          %s233 = smul.addr %s232, 4
          %s234 = smul.addr %s233, 8
          %s235 = scalar_lea.vmem %s4, %s234
        $region40: #{tpu_custom_call.1} parent=31 // pred_fallthru
          _
      $region32: #{tpu_custom_call.1} parent=5 // pred_fallthru
        _
      %p236 = scmp.le.s32.totalorder 1, %s15
      %p237 = scmp.lt.s32.totalorder %s15, 3
      %p238 = pnand %p236, %p237
      %p239 = pneg %p238
      // Predicated region
      $region41: #{tpu_custom_call.1} parent=5 // pred_check
        _
      $region42: #{tpu_custom_call.1} parent=5 // pred_check_branch
        %241 = sbr.rel (%p238) target = $region44
      $region43: #{tpu_custom_call.1} parent=5 // pred_region
        %s242 = ssub.s32 %s15, 1
        %p243 = scmp.lt.s32.totalorder %s24, 1
        %s244 = scalar_select %p243, %s24, 1
        %s245 = smul.addr %s244, 3
        %s246 = smul.addr %s245, 4
        %s247 = scalar_lea.vmem %s0, %s246
        %p248 = pneg %p53
        %p249 = pneg %p50
        %p250 = pneg %p74
        %p251 = pneg %p71
        %p252 = pneg %p95
        %p253 = pneg %p92
        %p254 = pneg %p116
        %p255 = pneg %p113
        %p256 = scmp.lt.s32.totalorder %s24, 1
        %s257 = scalar_select %p256, %s24, 1
        %s258 = smul.addr %s257, 4
        %s259 = smul.addr %s258, 8
        %s260 = scalar_lea.vmem %s4, %s259
        %p261 = pneg %p142
        %p262 = pneg %p139
        %p263 = pneg %p163
        %p264 = pneg %p160
        %p265 = pneg %p189
        %p266 = pneg %p186
        %s267 = sand.u32 %s176, 1
        %s268 = scalar_lea.sflag [#allocation4], %s267
        %s269 = sand.u32 %s176, 1
        %s270 = smul.addr %s269, 64
        %s271 = scalar_lea.vmem [#allocation3], %s270
        %p272 = scmp.lt.s32.totalorder %s24, 1
        %s273 = scalar_select %p272, %s24, 1
        %s274 = smul.addr %s273, 3
        %s275 = smul.addr %s274, 4
        %s276 = scalar_lea.vmem %s0, %s275
        %p277 = scmp.lt.s32.totalorder %s24, 1
        %s278 = scalar_select %p277, %s24, 1
        %s279 = smul.addr %s278, 4
        %s280 = smul.addr %s279, 8
        %s281 = scalar_lea.vmem %s4, %s280
        %s282 = smul.u32 %s25, 256
        %s283 = sshra.s32 %s282, 7
        %s284 = sand.u32 %s282, 127
        %s285 = smul.addr %s283, 4
        %s286 = scalar_lea.vmem %s276, %s285
        %v287 = vld [vmem:[%s286] sm:$0xff]
        %v288 = vld [vmem:[%s286 + $0x8] sm:$0xf]
        %s289 = smul.addr %s283, 4
        %s290 = scalar_lea.vmem %s5, %s289
        %v291 = vld [vmem:[%s290] sm:$0x77]
        %v293 = vlaneseq
        %v294 = vshrl.u32 %v293, 7
        %v295 = vsub.s32 0, %v294
        %v296 = vrot.slane %v291, %v295
        %v297 = vlaneseq
        %v298 = vshrl.u32 %v297, 7
        %v299 = vsub.s32 4, %v298
        %v300 = vrot.slane %v291, %v299
        %v303 = vlaneseq
        %v304 = vshrl.u32 %v303, 7
        %v305 = vsub.s32 0, %v304
        %v306 = vrot.slane %v296, %v305
        %v307 = vlaneseq
        %v308 = vshrl.u32 %v307, 7
        %v309 = vsub.s32 0, %v308
        %v310 = vrot.slane %v300, %v309
        %v313 = vcombine.low %v306, %v310
        %v315 = vmul.f32 %v287, %v313
        %v316 = vld [vmem:[%s1] sm:$0xff]
        %v317 = vld [vmem:[%s1 + $0x8] sm:$0xff]
        %v318 = vld [vmem:[%s1 + $0x10] sm:$0xff]
        %v319 = vld [vmem:[%s1 + $0x18] sm:$0xff]
        %s320 = scalar_lea.vmem %s1, 32
        %v321 = vld [vmem:[%s320] sm:$0xff]
        %v322 = vld [vmem:[%s320 + $0x8] sm:$0xff]
        %v323 = vld [vmem:[%s320 + $0x10] sm:$0xff]
        %v324 = vld [vmem:[%s320 + $0x18] sm:$0xff]
        %v327 = vcombine.high %v287, %v287
        %328 = vrot.lane.b32.xlu0 %v287, 127
        %v329 = vpop.permute.xlu0 %328
        %330 = vrot.lane.b32.xlu0 %v327, 127
        %v331 = vpop.permute.xlu0 %330
        %332 = vrot.lane.b32.xlu0 %v288, 127
        %v333 = vpop.permute.xlu0 %332
        %vm334 = vcmask 1039360
        %v335 = vsel %vm334, %v329, %v331
        %v336 = vsel %vm334, %v331, %v333
        %vm337 = vcmask 31744
        %v339 = vsel %vm337, %v321, 0
        %v342 = vsel %vm337, %v322, 0
        %v345 = vsel %vm337, %v323, 0
        %v348 = vsel %vm337, %v324, 0
        %vm350 = vcmask 1043456
        %v351 = vsel %vm350, %v335, 0
        %v353 = vsel %vm350, %v336, 0
        %355 = vmatprep.subr.mxu0 %v353
        %356 = vmatpush1.msra.mxu0 %v351
        %357 = vmatprep.subr.mxu0 0.0
        %358 = vmatpush1.msra.mxu0 0.0
        %359 = vmatprep.subr.mxu0 0.0
        %360 = vmatpush1.msra.mxu0 0.0
        %361 = vmatprep.subr.mxu0 0.0
        %362 = vmatpush1.msra.mxu0 0.0
        %363 = vmatprep.subr.mxu0 0.0
        %364 = vmatpush1.msra.mxu0 0.0
        %365 = vmatprep.subr.mxu0 0.0
        %366 = vmatpush1.msra.mxu0 0.0
        %367 = vmatprep.subr.mxu0 0.0
        %368 = vmatpush1.msra.mxu0 0.0
        %369 = vmatprep.subr.mxu0 0.0
        %370 = vmatpush1.msra.mxu0 0.0
        %371 = vmatprep.subr.mxu0 0.0
        %372 = vmatpush1.msra.mxu0 0.0
        %373 = vmatprep.subr.mxu0 0.0
        %374 = vmatpush1.msra.mxu0 0.0
        %375 = vmatprep.subr.mxu0 0.0
        %376 = vmatpush1.msra.mxu0 0.0
        %377 = vmatprep.subr.mxu0 0.0
        %378 = vmatpush1.msra.mxu0 0.0
        %379 = vmatprep.subr.mxu0 0.0
        %380 = vmatpush1.msra.mxu0 0.0
        %381 = vmatprep.subr.mxu0 0.0
        %382 = vmatpush1.msra.mxu0 0.0
        %383 = vmatprep.subr.mxu0 0.0
        %384 = vmatpush1.msra.mxu0 0.0
        %385 = vmatprep.subr.mxu0 0.0
        %386 = vmatpush1.msra.mxu0 0.0
        %387 = vmatprep.subr.mxu0 0.0
        %388 = vmatpush1.msra.mxu0 0.0
        %389 = vmatprep.subr.mxu0 0.0
        %390 = vmatpush1.msra.mxu0 0.0
        %391 = vmatprep.subr.mxu0 0.0
        %392 = vmatpush1.msra.mxu0 0.0
        %393 = vmatprep.subr.mxu0 0.0
        %394 = vmatpush1.msra.mxu0 0.0
        %395 = vmatprep.subr.mxu0 0.0
        %396 = vmatpush1.msra.mxu0 0.0
        %397 = vmatprep.subr.mxu0 0.0
        %398 = vmatpush1.msra.mxu0 0.0
        %399 = vmatprep.subr.mxu0 0.0
        %400 = vmatpush1.msra.mxu0 0.0
        %401 = vmatprep.subr.mxu0 0.0
        %402 = vmatpush1.msra.mxu0 0.0
        %403 = vmatprep.subr.mxu0 0.0
        %404 = vmatpush1.msra.mxu0 0.0
        %405 = vmatprep.subr.mxu0 0.0
        %406 = vmatpush1.msra.mxu0 0.0
        %407 = vmatprep.subr.mxu0 0.0
        %408 = vmatpush1.msra.mxu0 0.0
        %409 = vmatprep.subr.mxu0 0.0
        %410 = vmatpush1.msra.mxu0 0.0
        %411 = vmatprep.subr.mxu0 0.0
        %412 = vmatpush1.msra.mxu0 0.0
        %413 = vmatprep.subr.mxu0 0.0
        %414 = vmatpush1.msra.mxu0 0.0
        %415 = vmatprep.subr.mxu0 0.0
        %416 = vmatpush1.msra.mxu0 0.0
        %417 = vmatprep.subr.mxu0 0.0
        %418 = vmatpush1.msra.mxu0 0.0
        %419 = vmatprep.mubr.f32.mxu0 0.0
        %420 = vmatmul.mubr.f32.gmra.mrb[0].mxu0 %v339
        %v421 = vpop.f32.mrb[0].mxu0
        %v422 = vadd.f32 0.0, %v421
        %v423 = vpop.f32.mrb[0].mxu0
        %v424 = vadd.f32 0.0, %v423
        %425 = vmatprep.mubr.f32.mxu0 0.0
        %426 = vmatmul.mubr.f32.gmra.mrb[0].mxu0 %v342
        %v427 = vpop.f32.mrb[0].mxu0
        %v428 = vadd.f32 0.0, %v427
        %v429 = vpop.f32.mrb[0].mxu0
        %v430 = vadd.f32 0.0, %v429
        %431 = vmatprep.mubr.f32.mxu0 0.0
        %432 = vmatmul.mubr.f32.gmra.mrb[0].mxu0 %v345
        %v433 = vpop.f32.mrb[0].mxu0
        %v434 = vadd.f32 0.0, %v433
        %v435 = vpop.f32.mrb[0].mxu0
        %v436 = vadd.f32 0.0, %v435
        %437 = vmatprep.mubr.f32.mxu0 0.0
        %438 = vmatmul.mubr.f32.gmra.mrb[0].mxu0 %v348
        %v439 = vpop.f32.mrb[0].mxu0
        %v440 = vadd.f32 0.0, %v439
        %v441 = vpop.f32.mrb[0].mxu0
        %v442 = vadd.f32 0.0, %v441
        %443 = vdwg.mxu0
        %v445 = vcombine.high %v315, %v315
        %v447 = vsel %vm337, %v316, 0
        %v450 = vsel %vm337, %v317, 0
        %v453 = vsel %vm337, %v318, 0
        %v456 = vsel %vm337, %v319, 0
        %v458 = vsel %vm350, %v315, 0
        %v460 = vsel %vm350, %v445, 0
        %462 = vmatprep.subr.mxu0 %v460
        %463 = vmatpush1.msra.mxu0 %v458
        %464 = vmatprep.subr.mxu0 0.0
        %465 = vmatpush1.msra.mxu0 0.0
        %466 = vmatprep.subr.mxu0 0.0
        %467 = vmatpush1.msra.mxu0 0.0
        %468 = vmatprep.subr.mxu0 0.0
        %469 = vmatpush1.msra.mxu0 0.0
        %470 = vmatprep.subr.mxu0 0.0
        %471 = vmatpush1.msra.mxu0 0.0
        %472 = vmatprep.subr.mxu0 0.0
        %473 = vmatpush1.msra.mxu0 0.0
        %474 = vmatprep.subr.mxu0 0.0
        %475 = vmatpush1.msra.mxu0 0.0
        %476 = vmatprep.subr.mxu0 0.0
        %477 = vmatpush1.msra.mxu0 0.0
        %478 = vmatprep.subr.mxu0 0.0
        %479 = vmatpush1.msra.mxu0 0.0
        %480 = vmatprep.subr.mxu0 0.0
        %481 = vmatpush1.msra.mxu0 0.0
        %482 = vmatprep.subr.mxu0 0.0
        %483 = vmatpush1.msra.mxu0 0.0
        %484 = vmatprep.subr.mxu0 0.0
        %485 = vmatpush1.msra.mxu0 0.0
        %486 = vmatprep.subr.mxu0 0.0
        %487 = vmatpush1.msra.mxu0 0.0
        %488 = vmatprep.subr.mxu0 0.0
        %489 = vmatpush1.msra.mxu0 0.0
        %490 = vmatprep.subr.mxu0 0.0
        %491 = vmatpush1.msra.mxu0 0.0
        %492 = vmatprep.subr.mxu0 0.0
        %493 = vmatpush1.msra.mxu0 0.0
        %494 = vmatprep.subr.mxu0 0.0
        %495 = vmatpush1.msra.mxu0 0.0
        %496 = vmatprep.subr.mxu0 0.0
        %497 = vmatpush1.msra.mxu0 0.0
        %498 = vmatprep.subr.mxu0 0.0
        %499 = vmatpush1.msra.mxu0 0.0
        %500 = vmatprep.subr.mxu0 0.0
        %501 = vmatpush1.msra.mxu0 0.0
        %502 = vmatprep.subr.mxu0 0.0
        %503 = vmatpush1.msra.mxu0 0.0
        %504 = vmatprep.subr.mxu0 0.0
        %505 = vmatpush1.msra.mxu0 0.0
        %506 = vmatprep.subr.mxu0 0.0
        %507 = vmatpush1.msra.mxu0 0.0
        %508 = vmatprep.subr.mxu0 0.0
        %509 = vmatpush1.msra.mxu0 0.0
        %510 = vmatprep.subr.mxu0 0.0
        %511 = vmatpush1.msra.mxu0 0.0
        %512 = vmatprep.subr.mxu0 0.0
        %513 = vmatpush1.msra.mxu0 0.0
        %514 = vmatprep.subr.mxu0 0.0
        %515 = vmatpush1.msra.mxu0 0.0
        %516 = vmatprep.subr.mxu0 0.0
        %517 = vmatpush1.msra.mxu0 0.0
        %518 = vmatprep.subr.mxu0 0.0
        %519 = vmatpush1.msra.mxu0 0.0
        %520 = vmatprep.subr.mxu0 0.0
        %521 = vmatpush1.msra.mxu0 0.0
        %522 = vmatprep.subr.mxu0 0.0
        %523 = vmatpush1.msra.mxu0 0.0
        %524 = vmatprep.subr.mxu0 0.0
        %525 = vmatpush1.msra.mxu0 0.0
        %526 = vmatprep.mubr.f32.mxu0 0.0
        %527 = vmatmul.mubr.f32.gmra.mrb[0].mxu0 %v447
        %v528 = vpop.f32.mrb[0].mxu0
        %v529 = vadd.f32 %v422, %v528
        %v530 = vpop.f32.mrb[0].mxu0
        %v531 = vadd.f32 %v424, %v530
        %532 = vmatprep.mubr.f32.mxu0 0.0
        %533 = vmatmul.mubr.f32.gmra.mrb[0].mxu0 %v450
        %v534 = vpop.f32.mrb[0].mxu0
        %v535 = vadd.f32 %v428, %v534
        %v536 = vpop.f32.mrb[0].mxu0
        %v537 = vadd.f32 %v430, %v536
        %538 = vmatprep.mubr.f32.mxu0 0.0
        %539 = vmatmul.mubr.f32.gmra.mrb[0].mxu0 %v453
        %v540 = vpop.f32.mrb[0].mxu0
        %v541 = vadd.f32 %v434, %v540
        %v542 = vpop.f32.mrb[0].mxu0
        %v543 = vadd.f32 %v436, %v542
        %544 = vmatprep.mubr.f32.mxu0 0.0
        %545 = vmatmul.mubr.f32.gmra.mrb[0].mxu0 %v456
        %v546 = vpop.f32.mrb[0].mxu0
        %v547 = vadd.f32 %v440, %v546
        %v548 = vpop.f32.mrb[0].mxu0
        %v549 = vadd.f32 %v442, %v548
        %550 = vdwg.mxu0
        %v551 = vlaneseq
        %v552 = vshrl.u32 %v551, 7
        %v553 = vsub.s32 2, %v552
        %v554 = vrot.slane %v291, %v553
        %v555 = vlaneseq
        %v556 = vshrl.u32 %v555, 7
        %v557 = vsub.s32 6, %v556
        %v558 = vrot.slane %v291, %v557
        %v561 = vlaneseq
        %v562 = vshrl.u32 %v561, 7
        %v563 = vsub.s32 2, %v562
        %v564 = vrot.slane %v554, %v563
        %v565 = vlaneseq
        %v566 = vshrl.u32 %v565, 7
        %v567 = vsub.s32 2, %v566
        %v568 = vrot.slane %v558, %v567
        %v571 = vcombine.low %v564, %v568
        %572 = vrot.lane.b32.xlu0 %v571, 2
        %v573 = vpop.permute.xlu0 %572
        %v574 = vrot.slane %v573, 4
        %vm575 = vcmask 15360
        %v576 = vsel %vm575, %v574, %v573
        %v579 = vmul.f32 %v287, %v576
        %v580 = vmul.f32 %v288, %v574
        %s581 = scalar_lea.vmem %s1, 64
        %v582 = vld [vmem:[%s581] sm:$0xff]
        %v583 = vld [vmem:[%s581 + $0x8] sm:$0xff]
        %v584 = vld [vmem:[%s581 + $0x10] sm:$0xff]
        %v585 = vld [vmem:[%s581 + $0x18] sm:$0xff]
        %v588 = vcombine.high %v579, %v579
        %589 = vrot.lane.b32.xlu0 %v579, 126
        %v590 = vpop.permute.xlu0 %589
        %591 = vrot.lane.b32.xlu0 %v588, 126
        %v592 = vpop.permute.xlu0 %591
        %593 = vrot.lane.b32.xlu0 %v580, 126
        %v594 = vpop.permute.xlu0 %593
        %vm595 = vcmask 1031168
        %v596 = vsel %vm595, %v590, %v592
        %v597 = vsel %vm595, %v592, %v594
        %v599 = vsel %vm337, %v582, 0
        %v602 = vsel %vm337, %v583, 0
        %v605 = vsel %vm337, %v584, 0
        %v608 = vsel %vm337, %v585, 0
        %v610 = vsel %vm350, %v596, 0
        %v612 = vsel %vm350, %v597, 0
        %614 = vmatprep.subr.mxu0 %v612
        %615 = vmatpush1.msra.mxu0 %v610
        %616 = vmatprep.subr.mxu0 0.0
        %617 = vmatpush1.msra.mxu0 0.0
        %618 = vmatprep.subr.mxu0 0.0
        %619 = vmatpush1.msra.mxu0 0.0
        %620 = vmatprep.subr.mxu0 0.0
        %621 = vmatpush1.msra.mxu0 0.0
        %622 = vmatprep.subr.mxu0 0.0
        %623 = vmatpush1.msra.mxu0 0.0
        %624 = vmatprep.subr.mxu0 0.0
        %625 = vmatpush1.msra.mxu0 0.0
        %626 = vmatprep.subr.mxu0 0.0
        %627 = vmatpush1.msra.mxu0 0.0
        %628 = vmatprep.subr.mxu0 0.0
        %629 = vmatpush1.msra.mxu0 0.0
        %630 = vmatprep.subr.mxu0 0.0
        %631 = vmatpush1.msra.mxu0 0.0
        %632 = vmatprep.subr.mxu0 0.0
        %633 = vmatpush1.msra.mxu0 0.0
        %634 = vmatprep.subr.mxu0 0.0
        %635 = vmatpush1.msra.mxu0 0.0
        %636 = vmatprep.subr.mxu0 0.0
        %637 = vmatpush1.msra.mxu0 0.0
        %638 = vmatprep.subr.mxu0 0.0
        %639 = vmatpush1.msra.mxu0 0.0
        %640 = vmatprep.subr.mxu0 0.0
        %641 = vmatpush1.msra.mxu0 0.0
        %642 = vmatprep.subr.mxu0 0.0
        %643 = vmatpush1.msra.mxu0 0.0
        %644 = vmatprep.subr.mxu0 0.0
        %645 = vmatpush1.msra.mxu0 0.0
        %646 = vmatprep.subr.mxu0 0.0
        %647 = vmatpush1.msra.mxu0 0.0
        %648 = vmatprep.subr.mxu0 0.0
        %649 = vmatpush1.msra.mxu0 0.0
        %650 = vmatprep.subr.mxu0 0.0
        %651 = vmatpush1.msra.mxu0 0.0
        %652 = vmatprep.subr.mxu0 0.0
        %653 = vmatpush1.msra.mxu0 0.0
        %654 = vmatprep.subr.mxu0 0.0
        %655 = vmatpush1.msra.mxu0 0.0
        %656 = vmatprep.subr.mxu0 0.0
        %657 = vmatpush1.msra.mxu0 0.0
        %658 = vmatprep.subr.mxu0 0.0
        %659 = vmatpush1.msra.mxu0 0.0
        %660 = vmatprep.subr.mxu0 0.0
        %661 = vmatpush1.msra.mxu0 0.0
        %662 = vmatprep.subr.mxu0 0.0
        %663 = vmatpush1.msra.mxu0 0.0
        %664 = vmatprep.subr.mxu0 0.0
        %665 = vmatpush1.msra.mxu0 0.0
        %666 = vmatprep.subr.mxu0 0.0
        %667 = vmatpush1.msra.mxu0 0.0
        %668 = vmatprep.subr.mxu0 0.0
        %669 = vmatpush1.msra.mxu0 0.0
        %670 = vmatprep.subr.mxu0 0.0
        %671 = vmatpush1.msra.mxu0 0.0
        %672 = vmatprep.subr.mxu0 0.0
        %673 = vmatpush1.msra.mxu0 0.0
        %674 = vmatprep.subr.mxu0 0.0
        %675 = vmatpush1.msra.mxu0 0.0
        %676 = vmatprep.subr.mxu0 0.0
        %677 = vmatpush1.msra.mxu0 0.0
        %678 = vmatprep.mubr.f32.mxu0 0.0
        %679 = vmatmul.mubr.f32.gmra.mrb[0].mxu0 %v599
        %v680 = vpop.f32.mrb[0].mxu0
        %v681 = vadd.f32 0.0, %v680
        %v682 = vpop.f32.mrb[0].mxu0
        %v683 = vadd.f32 0.0, %v682
        %684 = vmatprep.mubr.f32.mxu0 0.0
        %685 = vmatmul.mubr.f32.gmra.mrb[0].mxu0 %v602
        %v686 = vpop.f32.mrb[0].mxu0
        %v687 = vadd.f32 0.0, %v686
        %v688 = vpop.f32.mrb[0].mxu0
        %v689 = vadd.f32 0.0, %v688
        %690 = vmatprep.mubr.f32.mxu0 0.0
        %691 = vmatmul.mubr.f32.gmra.mrb[0].mxu0 %v605
        %v692 = vpop.f32.mrb[0].mxu0
        %v693 = vadd.f32 0.0, %v692
        %v694 = vpop.f32.mrb[0].mxu0
        %v695 = vadd.f32 0.0, %v694
        %696 = vmatprep.mubr.f32.mxu0 0.0
        %697 = vmatmul.mubr.f32.gmra.mrb[0].mxu0 %v608
        %v698 = vpop.f32.mrb[0].mxu0
        %v699 = vadd.f32 0.0, %v698
        %v700 = vpop.f32.mrb[0].mxu0
        %v701 = vadd.f32 0.0, %v700
        %702 = vdwg.mxu0
        %v703 = vadd.f32 %v529, %v681
        %v704 = vadd.f32 %v531, %v683
        %v705 = vadd.f32 %v535, %v687
        %v706 = vadd.f32 %v537, %v689
        %v707 = vadd.f32 %v541, %v693
        %v708 = vadd.f32 %v543, %v695
        %v709 = vadd.f32 %v547, %v699
        %v710 = vadd.f32 %v549, %v701
        %711 = vrot.lane.b32.xlu0 %v313, 16
        %v712 = vpop.permute.xlu0 %711
        %v713 = vrot.slane %v712, 4
        %vm714 = vcmask 130048
        %v715 = vsel %vm714, %v713, %v712
        %v718 = vmul.f32 %v287, %v715
        %v719 = vmul.f32 %v288, %v713
        %s720 = scalar_lea.vmem %s1, 96
        %v721 = vld [vmem:[%s720] sm:$0xff]
        %v722 = vld [vmem:[%s720 + $0x8] sm:$0xff]
        %v723 = vld [vmem:[%s720 + $0x10] sm:$0xff]
        %v724 = vld [vmem:[%s720 + $0x18] sm:$0xff]
        %v727 = vcombine.high %v718, %v718
        %728 = vrot.lane.b32.xlu0 %v718, 112
        %v729 = vpop.permute.xlu0 %728
        %730 = vrot.lane.b32.xlu0 %v727, 112
        %v731 = vpop.permute.xlu0 %730
        %732 = vrot.lane.b32.xlu0 %v719, 112
        %v733 = vpop.permute.xlu0 %732
        %vm734 = vcmask 916480
        %v735 = vsel %vm734, %v729, %v731
        %v736 = vsel %vm734, %v731, %v733
        %v738 = vsel %vm337, %v721, 0
        %v741 = vsel %vm337, %v722, 0
        %v744 = vsel %vm337, %v723, 0
        %v747 = vsel %vm337, %v724, 0
        %v749 = vsel %vm350, %v735, 0
        %v751 = vsel %vm350, %v736, 0
        %753 = vmatprep.subr.mxu0 %v751
        %754 = vmatpush1.msra.mxu0 %v749
        %755 = vmatprep.subr.mxu0 0.0
        %756 = vmatpush1.msra.mxu0 0.0
        %757 = vmatprep.subr.mxu0 0.0
        %758 = vmatpush1.msra.mxu0 0.0
        %759 = vmatprep.subr.mxu0 0.0
        %760 = vmatpush1.msra.mxu0 0.0
        %761 = vmatprep.subr.mxu0 0.0
        %762 = vmatpush1.msra.mxu0 0.0
        %763 = vmatprep.subr.mxu0 0.0
        %764 = vmatpush1.msra.mxu0 0.0
        %765 = vmatprep.subr.mxu0 0.0
        %766 = vmatpush1.msra.mxu0 0.0
        %767 = vmatprep.subr.mxu0 0.0
        %768 = vmatpush1.msra.mxu0 0.0
        %769 = vmatprep.subr.mxu0 0.0
        %770 = vmatpush1.msra.mxu0 0.0
        %771 = vmatprep.subr.mxu0 0.0
        %772 = vmatpush1.msra.mxu0 0.0
        %773 = vmatprep.subr.mxu0 0.0
        %774 = vmatpush1.msra.mxu0 0.0
        %775 = vmatprep.subr.mxu0 0.0
        %776 = vmatpush1.msra.mxu0 0.0
        %777 = vmatprep.subr.mxu0 0.0
        %778 = vmatpush1.msra.mxu0 0.0
        %779 = vmatprep.subr.mxu0 0.0
        %780 = vmatpush1.msra.mxu0 0.0
        %781 = vmatprep.subr.mxu0 0.0
        %782 = vmatpush1.msra.mxu0 0.0
        %783 = vmatprep.subr.mxu0 0.0
        %784 = vmatpush1.msra.mxu0 0.0
        %785 = vmatprep.subr.mxu0 0.0
        %786 = vmatpush1.msra.mxu0 0.0
        %787 = vmatprep.subr.mxu0 0.0
        %788 = vmatpush1.msra.mxu0 0.0
        %789 = vmatprep.subr.mxu0 0.0
        %790 = vmatpush1.msra.mxu0 0.0
        %791 = vmatprep.subr.mxu0 0.0
        %792 = vmatpush1.msra.mxu0 0.0
        %793 = vmatprep.subr.mxu0 0.0
        %794 = vmatpush1.msra.mxu0 0.0
        %795 = vmatprep.subr.mxu0 0.0
        %796 = vmatpush1.msra.mxu0 0.0
        %797 = vmatprep.subr.mxu0 0.0
        %798 = vmatpush1.msra.mxu0 0.0
        %799 = vmatprep.subr.mxu0 0.0
        %800 = vmatpush1.msra.mxu0 0.0
        %801 = vmatprep.subr.mxu0 0.0
        %802 = vmatpush1.msra.mxu0 0.0
        %803 = vmatprep.subr.mxu0 0.0
        %804 = vmatpush1.msra.mxu0 0.0
        %805 = vmatprep.subr.mxu0 0.0
        %806 = vmatpush1.msra.mxu0 0.0
        %807 = vmatprep.subr.mxu0 0.0
        %808 = vmatpush1.msra.mxu0 0.0
        %809 = vmatprep.subr.mxu0 0.0
        %810 = vmatpush1.msra.mxu0 0.0
        %811 = vmatprep.subr.mxu0 0.0
        %812 = vmatpush1.msra.mxu0 0.0
        %813 = vmatprep.subr.mxu0 0.0
        %814 = vmatpush1.msra.mxu0 0.0
        %815 = vmatprep.subr.mxu0 0.0
        %816 = vmatpush1.msra.mxu0 0.0
        %817 = vmatprep.mubr.f32.mxu0 0.0
        %818 = vmatmul.mubr.f32.gmra.mrb[0].mxu0 %v738
        %v819 = vpop.f32.mrb[0].mxu0
        %v820 = vadd.f32 0.0, %v819
        %v821 = vpop.f32.mrb[0].mxu0
        %v822 = vadd.f32 0.0, %v821
        %823 = vmatprep.mubr.f32.mxu0 0.0
        %824 = vmatmul.mubr.f32.gmra.mrb[0].mxu0 %v741
        %v825 = vpop.f32.mrb[0].mxu0
        %v826 = vadd.f32 0.0, %v825
        %v827 = vpop.f32.mrb[0].mxu0
        %v828 = vadd.f32 0.0, %v827
        %829 = vmatprep.mubr.f32.mxu0 0.0
        %830 = vmatmul.mubr.f32.gmra.mrb[0].mxu0 %v744
        %v831 = vpop.f32.mrb[0].mxu0
        %v832 = vadd.f32 0.0, %v831
        %v833 = vpop.f32.mrb[0].mxu0
        %v834 = vadd.f32 0.0, %v833
        %835 = vmatprep.mubr.f32.mxu0 0.0
        %836 = vmatmul.mubr.f32.gmra.mrb[0].mxu0 %v747
        %v837 = vpop.f32.mrb[0].mxu0
        %v838 = vadd.f32 0.0, %v837
        %v839 = vpop.f32.mrb[0].mxu0
        %v840 = vadd.f32 0.0, %v839
        %841 = vdwg.mxu0
        %v842 = vadd.f32 %v703, %v820
        %v843 = vadd.f32 %v704, %v822
        %v844 = vadd.f32 %v705, %v826
        %v845 = vadd.f32 %v706, %v828
        %v846 = vadd.f32 %v707, %v832
        %v847 = vadd.f32 %v708, %v834
        %v848 = vadd.f32 %v709, %v838
        %v849 = vadd.f32 %v710, %v840
        %s850 = scalar_lea.vmem %s1, 128
        %v851 = vld [vmem:[%s850] sm:$0xff]
        %v852 = vld [vmem:[%s850 + $0x8] sm:$0xff]
        %v853 = vld [vmem:[%s850 + $0x10] sm:$0xff]
        %v854 = vld [vmem:[%s850 + $0x18] sm:$0xff]
        %855 = vrot.lane.b32.xlu0 %v287, 111
        %v856 = vpop.permute.xlu0 %855
        %857 = vrot.lane.b32.xlu0 %v327, 111
        %v858 = vpop.permute.xlu0 %857
        %859 = vrot.lane.b32.xlu0 %v288, 111
        %v860 = vpop.permute.xlu0 %859
        %vm861 = vcmask 908288
        %v862 = vsel %vm861, %v856, %v858
        %v863 = vsel %vm861, %v858, %v860
        %v865 = vsel %vm337, %v851, 0
        %v868 = vsel %vm337, %v852, 0
        %v871 = vsel %vm337, %v853, 0
        %v874 = vsel %vm337, %v854, 0
        %v876 = vsel %vm350, %v862, 0
        %v878 = vsel %vm350, %v863, 0
        %880 = vmatprep.subr.mxu0 %v878
        %881 = vmatpush1.msra.mxu0 %v876
        %882 = vmatprep.subr.mxu0 0.0
        %883 = vmatpush1.msra.mxu0 0.0
        %884 = vmatprep.subr.mxu0 0.0
        %885 = vmatpush1.msra.mxu0 0.0
        %886 = vmatprep.subr.mxu0 0.0
        %887 = vmatpush1.msra.mxu0 0.0
        %888 = vmatprep.subr.mxu0 0.0
        %889 = vmatpush1.msra.mxu0 0.0
        %890 = vmatprep.subr.mxu0 0.0
        %891 = vmatpush1.msra.mxu0 0.0
        %892 = vmatprep.subr.mxu0 0.0
        %893 = vmatpush1.msra.mxu0 0.0
        %894 = vmatprep.subr.mxu0 0.0
        %895 = vmatpush1.msra.mxu0 0.0
        %896 = vmatprep.subr.mxu0 0.0
        %897 = vmatpush1.msra.mxu0 0.0
        %898 = vmatprep.subr.mxu0 0.0
        %899 = vmatpush1.msra.mxu0 0.0
        %900 = vmatprep.subr.mxu0 0.0
        %901 = vmatpush1.msra.mxu0 0.0
        %902 = vmatprep.subr.mxu0 0.0
        %903 = vmatpush1.msra.mxu0 0.0
        %904 = vmatprep.subr.mxu0 0.0
        %905 = vmatpush1.msra.mxu0 0.0
        %906 = vmatprep.subr.mxu0 0.0
        %907 = vmatpush1.msra.mxu0 0.0
        %908 = vmatprep.subr.mxu0 0.0
        %909 = vmatpush1.msra.mxu0 0.0
        %910 = vmatprep.subr.mxu0 0.0
        %911 = vmatpush1.msra.mxu0 0.0
        %912 = vmatprep.subr.mxu0 0.0
        %913 = vmatpush1.msra.mxu0 0.0
        %914 = vmatprep.subr.mxu0 0.0
        %915 = vmatpush1.msra.mxu0 0.0
        %916 = vmatprep.subr.mxu0 0.0
        %917 = vmatpush1.msra.mxu0 0.0
        %918 = vmatprep.subr.mxu0 0.0
        %919 = vmatpush1.msra.mxu0 0.0
        %920 = vmatprep.subr.mxu0 0.0
        %921 = vmatpush1.msra.mxu0 0.0
        %922 = vmatprep.subr.mxu0 0.0
        %923 = vmatpush1.msra.mxu0 0.0
        %924 = vmatprep.subr.mxu0 0.0
        %925 = vmatpush1.msra.mxu0 0.0
        %926 = vmatprep.subr.mxu0 0.0
        %927 = vmatpush1.msra.mxu0 0.0
        %928 = vmatprep.subr.mxu0 0.0
        %929 = vmatpush1.msra.mxu0 0.0
        %930 = vmatprep.subr.mxu0 0.0
        %931 = vmatpush1.msra.mxu0 0.0
        %932 = vmatprep.subr.mxu0 0.0
        %933 = vmatpush1.msra.mxu0 0.0
        %934 = vmatprep.subr.mxu0 0.0
        %935 = vmatpush1.msra.mxu0 0.0
        %936 = vmatprep.subr.mxu0 0.0
        %937 = vmatpush1.msra.mxu0 0.0
        %938 = vmatprep.subr.mxu0 0.0
        %939 = vmatpush1.msra.mxu0 0.0
        %940 = vmatprep.subr.mxu0 0.0
        %941 = vmatpush1.msra.mxu0 0.0
        %942 = vmatprep.subr.mxu0 0.0
        %943 = vmatpush1.msra.mxu0 0.0
        %944 = vmatprep.mubr.f32.mxu0 0.0
        %945 = vmatmul.mubr.f32.gmra.mrb[0].mxu0 %v865
        %v946 = vpop.f32.mrb[0].mxu0
        %v947 = vadd.f32 0.0, %v946
        %v948 = vpop.f32.mrb[0].mxu0
        %v949 = vadd.f32 0.0, %v948
        %950 = vmatprep.mubr.f32.mxu0 0.0
        %951 = vmatmul.mubr.f32.gmra.mrb[0].mxu0 %v868
        %v952 = vpop.f32.mrb[0].mxu0
        %v953 = vadd.f32 0.0, %v952
        %v954 = vpop.f32.mrb[0].mxu0
        %v955 = vadd.f32 0.0, %v954
        %956 = vmatprep.mubr.f32.mxu0 0.0
        %957 = vmatmul.mubr.f32.gmra.mrb[0].mxu0 %v871
        %v958 = vpop.f32.mrb[0].mxu0
        %v959 = vadd.f32 0.0, %v958
        %v960 = vpop.f32.mrb[0].mxu0
        %v961 = vadd.f32 0.0, %v960
        %962 = vmatprep.mubr.f32.mxu0 0.0
        %963 = vmatmul.mubr.f32.gmra.mrb[0].mxu0 %v874
        %v964 = vpop.f32.mrb[0].mxu0
        %v965 = vadd.f32 0.0, %v964
        %v966 = vpop.f32.mrb[0].mxu0
        %v967 = vadd.f32 0.0, %v966
        %968 = vdwg.mxu0
        %v969 = vadd.f32 %v842, %v947
        %v970 = vadd.f32 %v843, %v949
        %v971 = vadd.f32 %v844, %v953
        %v972 = vadd.f32 %v845, %v955
        %v973 = vadd.f32 %v846, %v959
        %v974 = vadd.f32 %v847, %v961
        %v975 = vadd.f32 %v848, %v965
        %v976 = vadd.f32 %v849, %v967
        %977 = vrot.lane.b32.xlu0 %v571, 18
        %v978 = vpop.permute.xlu0 %977
        %v979 = vrot.slane %v978, 4
        %vm980 = vcmask 146432
        %v981 = vsel %vm980, %v979, %v978
        %v984 = vmul.f32 %v287, %v981
        %v985 = vmul.f32 %v288, %v979
        %s986 = scalar_lea.vmem %s1, 160
        %v987 = vld [vmem:[%s986] sm:$0xff]
        %v988 = vld [vmem:[%s986 + $0x8] sm:$0xff]
        %v989 = vld [vmem:[%s986 + $0x10] sm:$0xff]
        %v990 = vld [vmem:[%s986 + $0x18] sm:$0xff]
        %v993 = vcombine.high %v984, %v984
        %994 = vrot.lane.b32.xlu0 %v984, 110
        %v995 = vpop.permute.xlu0 %994
        %996 = vrot.lane.b32.xlu0 %v993, 110
        %v997 = vpop.permute.xlu0 %996
        %998 = vrot.lane.b32.xlu0 %v985, 110
        %v999 = vpop.permute.xlu0 %998
        %vm1000 = vcmask 900096
        %v1001 = vsel %vm1000, %v995, %v997
        %v1002 = vsel %vm1000, %v997, %v999
        %v1004 = vsel %vm337, %v987, 0
        %v1007 = vsel %vm337, %v988, 0
        %v1010 = vsel %vm337, %v989, 0
        %v1013 = vsel %vm337, %v990, 0
        %v1015 = vsel %vm350, %v1001, 0
        %v1017 = vsel %vm350, %v1002, 0
        %1019 = vmatprep.subr.mxu0 %v1017
        %1020 = vmatpush1.msra.mxu0 %v1015
        %1021 = vmatprep.subr.mxu0 0.0
        %1022 = vmatpush1.msra.mxu0 0.0
        %1023 = vmatprep.subr.mxu0 0.0
        %1024 = vmatpush1.msra.mxu0 0.0
        %1025 = vmatprep.subr.mxu0 0.0
        %1026 = vmatpush1.msra.mxu0 0.0
        %1027 = vmatprep.subr.mxu0 0.0
        %1028 = vmatpush1.msra.mxu0 0.0
        %1029 = vmatprep.subr.mxu0 0.0
        %1030 = vmatpush1.msra.mxu0 0.0
        %1031 = vmatprep.subr.mxu0 0.0
        %1032 = vmatpush1.msra.mxu0 0.0
        %1033 = vmatprep.subr.mxu0 0.0
        %1034 = vmatpush1.msra.mxu0 0.0
        %1035 = vmatprep.subr.mxu0 0.0
        %1036 = vmatpush1.msra.mxu0 0.0
        %1037 = vmatprep.subr.mxu0 0.0
        %1038 = vmatpush1.msra.mxu0 0.0
        %1039 = vmatprep.subr.mxu0 0.0
        %1040 = vmatpush1.msra.mxu0 0.0
        %1041 = vmatprep.subr.mxu0 0.0
        %1042 = vmatpush1.msra.mxu0 0.0
        %1043 = vmatprep.subr.mxu0 0.0
        %1044 = vmatpush1.msra.mxu0 0.0
        %1045 = vmatprep.subr.mxu0 0.0
        %1046 = vmatpush1.msra.mxu0 0.0
        %1047 = vmatprep.subr.mxu0 0.0
        %1048 = vmatpush1.msra.mxu0 0.0
        %1049 = vmatprep.subr.mxu0 0.0
        %1050 = vmatpush1.msra.mxu0 0.0
        %1051 = vmatprep.subr.mxu0 0.0
        %1052 = vmatpush1.msra.mxu0 0.0
        %1053 = vmatprep.subr.mxu0 0.0
        %1054 = vmatpush1.msra.mxu0 0.0
        %1055 = vmatprep.subr.mxu0 0.0
        %1056 = vmatpush1.msra.mxu0 0.0
        %1057 = vmatprep.subr.mxu0 0.0
        %1058 = vmatpush1.msra.mxu0 0.0
        %1059 = vmatprep.subr.mxu0 0.0
        %1060 = vmatpush1.msra.mxu0 0.0
        %1061 = vmatprep.subr.mxu0 0.0
        %1062 = vmatpush1.msra.mxu0 0.0
        %1063 = vmatprep.subr.mxu0 0.0
        %1064 = vmatpush1.msra.mxu0 0.0
        %1065 = vmatprep.subr.mxu0 0.0
        %1066 = vmatpush1.msra.mxu0 0.0
        %1067 = vmatprep.subr.mxu0 0.0
        %1068 = vmatpush1.msra.mxu0 0.0
        %1069 = vmatprep.subr.mxu0 0.0
        %1070 = vmatpush1.msra.mxu0 0.0
        %1071 = vmatprep.subr.mxu0 0.0
        %1072 = vmatpush1.msra.mxu0 0.0
        %1073 = vmatprep.subr.mxu0 0.0
        %1074 = vmatpush1.msra.mxu0 0.0
        %1075 = vmatprep.subr.mxu0 0.0
        %1076 = vmatpush1.msra.mxu0 0.0
        %1077 = vmatprep.subr.mxu0 0.0
        %1078 = vmatpush1.msra.mxu0 0.0
        %1079 = vmatprep.subr.mxu0 0.0
        %1080 = vmatpush1.msra.mxu0 0.0
        %1081 = vmatprep.subr.mxu0 0.0
        %1082 = vmatpush1.msra.mxu0 0.0
        %1083 = vmatprep.mubr.f32.mxu0 0.0
        %1084 = vmatmul.mubr.f32.gmra.mrb[0].mxu0 %v1004
        %v1085 = vpop.f32.mrb[0].mxu0
        %v1086 = vadd.f32 0.0, %v1085
        %v1087 = vpop.f32.mrb[0].mxu0
        %v1088 = vadd.f32 0.0, %v1087
        %1089 = vmatprep.mubr.f32.mxu0 0.0
        %1090 = vmatmul.mubr.f32.gmra.mrb[0].mxu0 %v1007
        %v1091 = vpop.f32.mrb[0].mxu0
        %v1092 = vadd.f32 0.0, %v1091
        %v1093 = vpop.f32.mrb[0].mxu0
        %v1094 = vadd.f32 0.0, %v1093
        %1095 = vmatprep.mubr.f32.mxu0 0.0
        %1096 = vmatmul.mubr.f32.gmra.mrb[0].mxu0 %v1010
        %v1097 = vpop.f32.mrb[0].mxu0
        %v1098 = vadd.f32 0.0, %v1097
        %v1099 = vpop.f32.mrb[0].mxu0
        %v1100 = vadd.f32 0.0, %v1099
        %1101 = vmatprep.mubr.f32.mxu0 0.0
        %1102 = vmatmul.mubr.f32.gmra.mrb[0].mxu0 %v1013
        %v1103 = vpop.f32.mrb[0].mxu0
        %v1104 = vadd.f32 0.0, %v1103
        %v1105 = vpop.f32.mrb[0].mxu0
        %v1106 = vadd.f32 0.0, %v1105
        %1107 = vdwg.mxu0
        %v1108 = vadd.f32 %v969, %v1086
        %v1109 = vadd.f32 %v970, %v1088
        %v1110 = vadd.f32 %v971, %v1092
        %v1111 = vadd.f32 %v972, %v1094
        %v1112 = vadd.f32 %v973, %v1098
        %v1113 = vadd.f32 %v974, %v1100
        %v1114 = vadd.f32 %v975, %v1104
        %v1115 = vadd.f32 %v976, %v1106
        %1116 = vrot.lane.b32.xlu0 %v313, 32
        %v1117 = vpop.permute.xlu0 %1116
        %v1118 = vrot.slane %v1117, 4
        %vm1119 = vcmask 261120
        %v1120 = vsel %vm1119, %v1118, %v1117
        %v1123 = vmul.f32 %v287, %v1120
        %v1124 = vmul.f32 %v288, %v1118
        %s1125 = scalar_lea.vmem %s1, 192
        %v1126 = vld [vmem:[%s1125] sm:$0xff]
        %v1127 = vld [vmem:[%s1125 + $0x8] sm:$0xff]
        %v1128 = vld [vmem:[%s1125 + $0x10] sm:$0xff]
        %v1129 = vld [vmem:[%s1125 + $0x18] sm:$0xff]
        %v1132 = vcombine.high %v1123, %v1123
        %1133 = vrot.lane.b32.xlu0 %v1123, 96
        %v1134 = vpop.permute.xlu0 %1133
        %1135 = vrot.lane.b32.xlu0 %v1132, 96
        %v1136 = vpop.permute.xlu0 %1135
        %1137 = vrot.lane.b32.xlu0 %v1124, 96
        %v1138 = vpop.permute.xlu0 %1137
        %vm1139 = vcmask 785408
        %v1140 = vsel %vm1139, %v1134, %v1136
        %v1141 = vsel %vm1139, %v1136, %v1138
        %v1143 = vsel %vm337, %v1126, 0
        %v1146 = vsel %vm337, %v1127, 0
        %v1149 = vsel %vm337, %v1128, 0
        %v1152 = vsel %vm337, %v1129, 0
        %v1154 = vsel %vm350, %v1140, 0
        %v1156 = vsel %vm350, %v1141, 0
        %1158 = vmatprep.subr.mxu0 %v1156
        %1159 = vmatpush1.msra.mxu0 %v1154
        %1160 = vmatprep.subr.mxu0 0.0
        %1161 = vmatpush1.msra.mxu0 0.0
        %1162 = vmatprep.subr.mxu0 0.0
        %1163 = vmatpush1.msra.mxu0 0.0
        %1164 = vmatprep.subr.mxu0 0.0
        %1165 = vmatpush1.msra.mxu0 0.0
        %1166 = vmatprep.subr.mxu0 0.0
        %1167 = vmatpush1.msra.mxu0 0.0
        %1168 = vmatprep.subr.mxu0 0.0
        %1169 = vmatpush1.msra.mxu0 0.0
        %1170 = vmatprep.subr.mxu0 0.0
        %1171 = vmatpush1.msra.mxu0 0.0
        %1172 = vmatprep.subr.mxu0 0.0
        %1173 = vmatpush1.msra.mxu0 0.0
        %1174 = vmatprep.subr.mxu0 0.0
        %1175 = vmatpush1.msra.mxu0 0.0
        %1176 = vmatprep.subr.mxu0 0.0
        %1177 = vmatpush1.msra.mxu0 0.0
        %1178 = vmatprep.subr.mxu0 0.0
        %1179 = vmatpush1.msra.mxu0 0.0
        %1180 = vmatprep.subr.mxu0 0.0
        %1181 = vmatpush1.msra.mxu0 0.0
        %1182 = vmatprep.subr.mxu0 0.0
        %1183 = vmatpush1.msra.mxu0 0.0
        %1184 = vmatprep.subr.mxu0 0.0
        %1185 = vmatpush1.msra.mxu0 0.0
        %1186 = vmatprep.subr.mxu0 0.0
        %1187 = vmatpush1.msra.mxu0 0.0
        %1188 = vmatprep.subr.mxu0 0.0
        %1189 = vmatpush1.msra.mxu0 0.0
        %1190 = vmatprep.subr.mxu0 0.0
        %1191 = vmatpush1.msra.mxu0 0.0
        %1192 = vmatprep.subr.mxu0 0.0
        %1193 = vmatpush1.msra.mxu0 0.0
        %1194 = vmatprep.subr.mxu0 0.0
        %1195 = vmatpush1.msra.mxu0 0.0
        %1196 = vmatprep.subr.mxu0 0.0
        %1197 = vmatpush1.msra.mxu0 0.0
        %1198 = vmatprep.subr.mxu0 0.0
        %1199 = vmatpush1.msra.mxu0 0.0
        %1200 = vmatprep.subr.mxu0 0.0
        %1201 = vmatpush1.msra.mxu0 0.0
        %1202 = vmatprep.subr.mxu0 0.0
        %1203 = vmatpush1.msra.mxu0 0.0
        %1204 = vmatprep.subr.mxu0 0.0
        %1205 = vmatpush1.msra.mxu0 0.0
        %1206 = vmatprep.subr.mxu0 0.0
        %1207 = vmatpush1.msra.mxu0 0.0
        %1208 = vmatprep.subr.mxu0 0.0
        %1209 = vmatpush1.msra.mxu0 0.0
        %1210 = vmatprep.subr.mxu0 0.0
        %1211 = vmatpush1.msra.mxu0 0.0
        %1212 = vmatprep.subr.mxu0 0.0
        %1213 = vmatpush1.msra.mxu0 0.0
        %1214 = vmatprep.subr.mxu0 0.0
        %1215 = vmatpush1.msra.mxu0 0.0
        %1216 = vmatprep.subr.mxu0 0.0
        %1217 = vmatpush1.msra.mxu0 0.0
        %1218 = vmatprep.subr.mxu0 0.0
        %1219 = vmatpush1.msra.mxu0 0.0
        %1220 = vmatprep.subr.mxu0 0.0
        %1221 = vmatpush1.msra.mxu0 0.0
        %1222 = vmatprep.mubr.f32.mxu0 0.0
        %1223 = vmatmul.mubr.f32.gmra.mrb[0].mxu0 %v1143
        %v1224 = vpop.f32.mrb[0].mxu0
        %v1225 = vadd.f32 0.0, %v1224
        %v1226 = vpop.f32.mrb[0].mxu0
        %v1227 = vadd.f32 0.0, %v1226
        %1228 = vmatprep.mubr.f32.mxu0 0.0
        %1229 = vmatmul.mubr.f32.gmra.mrb[0].mxu0 %v1146
        %v1230 = vpop.f32.mrb[0].mxu0
        %v1231 = vadd.f32 0.0, %v1230
        %v1232 = vpop.f32.mrb[0].mxu0
        %v1233 = vadd.f32 0.0, %v1232
        %1234 = vmatprep.mubr.f32.mxu0 0.0
        %1235 = vmatmul.mubr.f32.gmra.mrb[0].mxu0 %v1149
        %v1236 = vpop.f32.mrb[0].mxu0
        %v1237 = vadd.f32 0.0, %v1236
        %v1238 = vpop.f32.mrb[0].mxu0
        %v1239 = vadd.f32 0.0, %v1238
        %1240 = vmatprep.mubr.f32.mxu0 0.0
        %1241 = vmatmul.mubr.f32.gmra.mrb[0].mxu0 %v1152
        %v1242 = vpop.f32.mrb[0].mxu0
        %v1243 = vadd.f32 0.0, %v1242
        %v1244 = vpop.f32.mrb[0].mxu0
        %v1245 = vadd.f32 0.0, %v1244
        %1246 = vdwg.mxu0
        %v1247 = vadd.f32 %v1108, %v1225
        %v1248 = vadd.f32 %v1109, %v1227
        %v1249 = vadd.f32 %v1110, %v1231
        %v1250 = vadd.f32 %v1111, %v1233
        %v1251 = vadd.f32 %v1112, %v1237
        %v1252 = vadd.f32 %v1113, %v1239
        %v1253 = vadd.f32 %v1114, %v1243
        %v1254 = vadd.f32 %v1115, %v1245
        %s1255 = scalar_lea.vmem %s1, 224
        %v1256 = vld [vmem:[%s1255] sm:$0xff]
        %v1257 = vld [vmem:[%s1255 + $0x8] sm:$0xff]
        %v1258 = vld [vmem:[%s1255 + $0x10] sm:$0xff]
        %v1259 = vld [vmem:[%s1255 + $0x18] sm:$0xff]
        %1260 = vrot.lane.b32.xlu0 %v287, 95
        %v1261 = vpop.permute.xlu0 %1260
        %1262 = vrot.lane.b32.xlu0 %v327, 95
        %v1263 = vpop.permute.xlu0 %1262
        %1264 = vrot.lane.b32.xlu0 %v288, 95
        %v1265 = vpop.permute.xlu0 %1264
        %vm1266 = vcmask 777216
        %v1267 = vsel %vm1266, %v1261, %v1263
        %v1268 = vsel %vm1266, %v1263, %v1265
        %v1270 = vsel %vm337, %v1256, 0
        %v1273 = vsel %vm337, %v1257, 0
        %v1276 = vsel %vm337, %v1258, 0
        %v1279 = vsel %vm337, %v1259, 0
        %v1281 = vsel %vm350, %v1267, 0
        %v1283 = vsel %vm350, %v1268, 0
        %1285 = vmatprep.subr.mxu0 %v1283
        %1286 = vmatpush1.msra.mxu0 %v1281
        %1287 = vmatprep.subr.mxu0 0.0
        %1288 = vmatpush1.msra.mxu0 0.0
        %1289 = vmatprep.subr.mxu0 0.0
        %1290 = vmatpush1.msra.mxu0 0.0
        %1291 = vmatprep.subr.mxu0 0.0
        %1292 = vmatpush1.msra.mxu0 0.0
        %1293 = vmatprep.subr.mxu0 0.0
        %1294 = vmatpush1.msra.mxu0 0.0
        %1295 = vmatprep.subr.mxu0 0.0
        %1296 = vmatpush1.msra.mxu0 0.0
        %1297 = vmatprep.subr.mxu0 0.0
        %1298 = vmatpush1.msra.mxu0 0.0
        %1299 = vmatprep.subr.mxu0 0.0
        %1300 = vmatpush1.msra.mxu0 0.0
        %1301 = vmatprep.subr.mxu0 0.0
        %1302 = vmatpush1.msra.mxu0 0.0
        %1303 = vmatprep.subr.mxu0 0.0
        %1304 = vmatpush1.msra.mxu0 0.0
        %1305 = vmatprep.subr.mxu0 0.0
        %1306 = vmatpush1.msra.mxu0 0.0
        %1307 = vmatprep.subr.mxu0 0.0
        %1308 = vmatpush1.msra.mxu0 0.0
        %1309 = vmatprep.subr.mxu0 0.0
        %1310 = vmatpush1.msra.mxu0 0.0
        %1311 = vmatprep.subr.mxu0 0.0
        %1312 = vmatpush1.msra.mxu0 0.0
        %1313 = vmatprep.subr.mxu0 0.0
        %1314 = vmatpush1.msra.mxu0 0.0
        %1315 = vmatprep.subr.mxu0 0.0
        %1316 = vmatpush1.msra.mxu0 0.0
        %1317 = vmatprep.subr.mxu0 0.0
        %1318 = vmatpush1.msra.mxu0 0.0
        %1319 = vmatprep.subr.mxu0 0.0
        %1320 = vmatpush1.msra.mxu0 0.0
        %1321 = vmatprep.subr.mxu0 0.0
        %1322 = vmatpush1.msra.mxu0 0.0
        %1323 = vmatprep.subr.mxu0 0.0
        %1324 = vmatpush1.msra.mxu0 0.0
        %1325 = vmatprep.subr.mxu0 0.0
        %1326 = vmatpush1.msra.mxu0 0.0
        %1327 = vmatprep.subr.mxu0 0.0
        %1328 = vmatpush1.msra.mxu0 0.0
        %1329 = vmatprep.subr.mxu0 0.0
        %1330 = vmatpush1.msra.mxu0 0.0
        %1331 = vmatprep.subr.mxu0 0.0
        %1332 = vmatpush1.msra.mxu0 0.0
        %1333 = vmatprep.subr.mxu0 0.0
        %1334 = vmatpush1.msra.mxu0 0.0
        %1335 = vmatprep.subr.mxu0 0.0
        %1336 = vmatpush1.msra.mxu0 0.0
        %1337 = vmatprep.subr.mxu0 0.0
        %1338 = vmatpush1.msra.mxu0 0.0
        %1339 = vmatprep.subr.mxu0 0.0
        %1340 = vmatpush1.msra.mxu0 0.0
        %1341 = vmatprep.subr.mxu0 0.0
        %1342 = vmatpush1.msra.mxu0 0.0
        %1343 = vmatprep.subr.mxu0 0.0
        %1344 = vmatpush1.msra.mxu0 0.0
        %1345 = vmatprep.subr.mxu0 0.0
        %1346 = vmatpush1.msra.mxu0 0.0
        %1347 = vmatprep.subr.mxu0 0.0
        %1348 = vmatpush1.msra.mxu0 0.0
        %1349 = vmatprep.mubr.f32.mxu0 0.0
        %1350 = vmatmul.mubr.f32.gmra.mrb[0].mxu0 %v1270
        %v1351 = vpop.f32.mrb[0].mxu0
        %v1352 = vadd.f32 0.0, %v1351
        %v1353 = vpop.f32.mrb[0].mxu0
        %v1354 = vadd.f32 0.0, %v1353
        %1355 = vmatprep.mubr.f32.mxu0 0.0
        %1356 = vmatmul.mubr.f32.gmra.mrb[0].mxu0 %v1273
        %v1357 = vpop.f32.mrb[0].mxu0
        %v1358 = vadd.f32 0.0, %v1357
        %v1359 = vpop.f32.mrb[0].mxu0
        %v1360 = vadd.f32 0.0, %v1359
        %1361 = vmatprep.mubr.f32.mxu0 0.0
        %1362 = vmatmul.mubr.f32.gmra.mrb[0].mxu0 %v1276
        %v1363 = vpop.f32.mrb[0].mxu0
        %v1364 = vadd.f32 0.0, %v1363
        %v1365 = vpop.f32.mrb[0].mxu0
        %v1366 = vadd.f32 0.0, %v1365
        %1367 = vmatprep.mubr.f32.mxu0 0.0
        %1368 = vmatmul.mubr.f32.gmra.mrb[0].mxu0 %v1279
        %v1369 = vpop.f32.mrb[0].mxu0
        %v1370 = vadd.f32 0.0, %v1369
        %v1371 = vpop.f32.mrb[0].mxu0
        %v1372 = vadd.f32 0.0, %v1371
        %1373 = vdwg.mxu0
        %v1374 = vadd.f32 %v1247, %v1352
        %v1375 = vadd.f32 %v1248, %v1354
        %v1376 = vadd.f32 %v1249, %v1358
        %v1377 = vadd.f32 %v1250, %v1360
        %v1378 = vadd.f32 %v1251, %v1364
        %v1379 = vadd.f32 %v1252, %v1366
        %v1380 = vadd.f32 %v1253, %v1370
        %v1381 = vadd.f32 %v1254, %v1372
        %1382 = vrot.lane.b32.xlu0 %v571, 34
        %v1383 = vpop.permute.xlu0 %1382
        %v1384 = vrot.slane %v1383, 4
        %vm1385 = vcmask 277504
        %v1386 = vsel %vm1385, %v1384, %v1383
        %v1389 = vmul.f32 %v287, %v1386
        %v1390 = vmul.f32 %v288, %v1384
        %s1391 = scalar_lea.vmem %s1, 256
        %v1392 = vld [vmem:[%s1391] sm:$0xff]
        %v1393 = vld [vmem:[%s1391 + $0x8] sm:$0xff]
        %v1394 = vld [vmem:[%s1391 + $0x10] sm:$0xff]
        %v1395 = vld [vmem:[%s1391 + $0x18] sm:$0xff]
        %v1398 = vcombine.high %v1389, %v1389
        %1399 = vrot.lane.b32.xlu0 %v1389, 94
        %v1400 = vpop.permute.xlu0 %1399
        %1401 = vrot.lane.b32.xlu0 %v1398, 94
        %v1402 = vpop.permute.xlu0 %1401
        %1403 = vrot.lane.b32.xlu0 %v1390, 94
        %v1404 = vpop.permute.xlu0 %1403
        %vm1405 = vcmask 769024
        %v1406 = vsel %vm1405, %v1400, %v1402
        %v1407 = vsel %vm1405, %v1402, %v1404
        %v1409 = vsel %vm337, %v1392, 0
        %v1412 = vsel %vm337, %v1393, 0
        %v1415 = vsel %vm337, %v1394, 0
        %v1418 = vsel %vm337, %v1395, 0
        %v1420 = vsel %vm350, %v1406, 0
        %v1422 = vsel %vm350, %v1407, 0
        %1424 = vmatprep.subr.mxu0 %v1422
        %1425 = vmatpush1.msra.mxu0 %v1420
        %1426 = vmatprep.subr.mxu0 0.0
        %1427 = vmatpush1.msra.mxu0 0.0
        %1428 = vmatprep.subr.mxu0 0.0
        %1429 = vmatpush1.msra.mxu0 0.0
        %1430 = vmatprep.subr.mxu0 0.0
        %1431 = vmatpush1.msra.mxu0 0.0
        %1432 = vmatprep.subr.mxu0 0.0
        %1433 = vmatpush1.msra.mxu0 0.0
        %1434 = vmatprep.subr.mxu0 0.0
        %1435 = vmatpush1.msra.mxu0 0.0
        %1436 = vmatprep.subr.mxu0 0.0
        %1437 = vmatpush1.msra.mxu0 0.0
        %1438 = vmatprep.subr.mxu0 0.0
        %1439 = vmatpush1.msra.mxu0 0.0
        %1440 = vmatprep.subr.mxu0 0.0
        %1441 = vmatpush1.msra.mxu0 0.0
        %1442 = vmatprep.subr.mxu0 0.0
        %1443 = vmatpush1.msra.mxu0 0.0
        %1444 = vmatprep.subr.mxu0 0.0
        %1445 = vmatpush1.msra.mxu0 0.0
        %1446 = vmatprep.subr.mxu0 0.0
        %1447 = vmatpush1.msra.mxu0 0.0
        %1448 = vmatprep.subr.mxu0 0.0
        %1449 = vmatpush1.msra.mxu0 0.0
        %1450 = vmatprep.subr.mxu0 0.0
        %1451 = vmatpush1.msra.mxu0 0.0
        %1452 = vmatprep.subr.mxu0 0.0
        %1453 = vmatpush1.msra.mxu0 0.0
        %1454 = vmatprep.subr.mxu0 0.0
        %1455 = vmatpush1.msra.mxu0 0.0
        %1456 = vmatprep.subr.mxu0 0.0
        %1457 = vmatpush1.msra.mxu0 0.0
        %1458 = vmatprep.subr.mxu0 0.0
        %1459 = vmatpush1.msra.mxu0 0.0
        %1460 = vmatprep.subr.mxu0 0.0
        %1461 = vmatpush1.msra.mxu0 0.0
        %1462 = vmatprep.subr.mxu0 0.0
        %1463 = vmatpush1.msra.mxu0 0.0
        %1464 = vmatprep.subr.mxu0 0.0
        %1465 = vmatpush1.msra.mxu0 0.0
        %1466 = vmatprep.subr.mxu0 0.0
        %1467 = vmatpush1.msra.mxu0 0.0
        %1468 = vmatprep.subr.mxu0 0.0
        %1469 = vmatpush1.msra.mxu0 0.0
        %1470 = vmatprep.subr.mxu0 0.0
        %1471 = vmatpush1.msra.mxu0 0.0
        %1472 = vmatprep.subr.mxu0 0.0
        %1473 = vmatpush1.msra.mxu0 0.0
        %1474 = vmatprep.subr.mxu0 0.0
        %1475 = vmatpush1.msra.mxu0 0.0
        %1476 = vmatprep.subr.mxu0 0.0
        %1477 = vmatpush1.msra.mxu0 0.0
        %1478 = vmatprep.subr.mxu0 0.0
        %1479 = vmatpush1.msra.mxu0 0.0
        %1480 = vmatprep.subr.mxu0 0.0
        %1481 = vmatpush1.msra.mxu0 0.0
        %1482 = vmatprep.subr.mxu0 0.0
        %1483 = vmatpush1.msra.mxu0 0.0
        %1484 = vmatprep.subr.mxu0 0.0
        %1485 = vmatpush1.msra.mxu0 0.0
        %1486 = vmatprep.subr.mxu0 0.0
        %1487 = vmatpush1.msra.mxu0 0.0
        %1488 = vmatprep.mubr.f32.mxu0 0.0
        %1489 = vmatmul.mubr.f32.gmra.mrb[0].mxu0 %v1409
        %v1490 = vpop.f32.mrb[0].mxu0
        %v1491 = vadd.f32 0.0, %v1490
        %v1492 = vpop.f32.mrb[0].mxu0
        %v1493 = vadd.f32 0.0, %v1492
        %1494 = vmatprep.mubr.f32.mxu0 0.0
        %1495 = vmatmul.mubr.f32.gmra.mrb[0].mxu0 %v1412
        %v1496 = vpop.f32.mrb[0].mxu0
        %v1497 = vadd.f32 0.0, %v1496
        %v1498 = vpop.f32.mrb[0].mxu0
        %v1499 = vadd.f32 0.0, %v1498
        %1500 = vmatprep.mubr.f32.mxu0 0.0
        %1501 = vmatmul.mubr.f32.gmra.mrb[0].mxu0 %v1415
        %v1502 = vpop.f32.mrb[0].mxu0
        %v1503 = vadd.f32 0.0, %v1502
        %v1504 = vpop.f32.mrb[0].mxu0
        %v1505 = vadd.f32 0.0, %v1504
        %1506 = vmatprep.mubr.f32.mxu0 0.0
        %1507 = vmatmul.mubr.f32.gmra.mrb[0].mxu0 %v1418
        %v1508 = vpop.f32.mrb[0].mxu0
        %v1509 = vadd.f32 0.0, %v1508
        %v1510 = vpop.f32.mrb[0].mxu0
        %v1511 = vadd.f32 0.0, %v1510
        %1512 = vdwg.mxu0
        %v1513 = vadd.f32 %v1374, %v1491
        %v1514 = vadd.f32 %v1375, %v1493
        %v1515 = vadd.f32 %v1376, %v1497
        %v1516 = vadd.f32 %v1377, %v1499
        %v1517 = vadd.f32 %v1378, %v1503
        %v1518 = vadd.f32 %v1379, %v1505
        %v1519 = vadd.f32 %v1380, %v1509
        %v1520 = vadd.f32 %v1381, %v1511
        %v1521 = vld [vmem:[%s2] sm:$0xff]
        %v1522 = vld [vmem:[%s2 + $0x8] sm:$0xff]
        %v1523 = vld [vmem:[%s2 + $0x10] sm:$0xff]
        %v1524 = vld [vmem:[%s2 + $0x18] sm:$0xff]
        %1526 = vset.pattern.permute.xlu0 0
        %1527 = vperm.xlu0 %1526, %v1521
        %v1528 = vpop.permute.xlu0 %1527
        %1531 = vset.pattern.permute.xlu0 0
        %1532 = vperm.xlu0 %1531, %v1522
        %v1533 = vpop.permute.xlu0 %1532
        %1536 = vset.pattern.permute.xlu0 0
        %1537 = vperm.xlu0 %1536, %v1523
        %v1538 = vpop.permute.xlu0 %1537
        %1541 = vset.pattern.permute.xlu0 0
        %1542 = vperm.xlu0 %1541, %v1524
        %v1543 = vpop.permute.xlu0 %1542
        %v1545 = vadd.f32 %v1513, %v1528
        %v1546 = vadd.f32 %v1514, %v1528
        %v1547 = vadd.f32 %v1515, %v1533
        %v1548 = vadd.f32 %v1516, %v1533
        %v1549 = vadd.f32 %v1517, %v1538
        %v1550 = vadd.f32 %v1518, %v1538
        %v1551 = vadd.f32 %v1519, %v1543
        %v1552 = vadd.f32 %v1520, %v1543
        %s1553 = smul.addr %s283, 8
        %s1554 = scalar_lea.vmem %s271, %s1553 [#allocation3]
        %1555 = vst [vmem:[%s1554] sm:$0xff] %v1545
        %1556 = vst [vmem:[%s1554 + $0x8] sm:$0xff] %v1546
        %1557 = vst [vmem:[%s1554 + $0x10] sm:$0xff] %v1547
        %1558 = vst [vmem:[%s1554 + $0x18] sm:$0xff] %v1548
        %1559 = vst [vmem:[%s1554 + $0x20] sm:$0xff] %v1549
        %1560 = vst [vmem:[%s1554 + $0x28] sm:$0xff] %v1550
        %1561 = vst [vmem:[%s1554 + $0x30] sm:$0xff] %v1551
        %1562 = vst [vmem:[%s1554 + $0x38] sm:$0xff] %v1552
        %v1563 = vlaneseq
        %v1564 = vshrl.u32 %v1563, 7
        %v1565 = vsub.s32 1, %v1564
        %v1566 = vrot.slane %v291, %v1565
        %v1567 = vlaneseq
        %v1568 = vshrl.u32 %v1567, 7
        %v1569 = vsub.s32 5, %v1568
        %v1570 = vrot.slane %v291, %v1569
        %v1573 = vlaneseq
        %v1574 = vshrl.u32 %v1573, 7
        %v1575 = vsub.s32 1, %v1574
        %v1576 = vrot.slane %v1566, %v1575
        %v1577 = vlaneseq
        %v1578 = vshrl.u32 %v1577, 7
        %v1579 = vsub.s32 1, %v1578
        %v1580 = vrot.slane %v1570, %v1579
        %v1581 = vmul.f32 %v1545, %v1576
        %v1582 = vmul.f32 %v1546, %v1580
        %v1583 = vmul.f32 %v1547, %v1576
        %v1584 = vmul.f32 %v1548, %v1580
        %v1585 = vmul.f32 %v1549, %v1576
        %v1586 = vmul.f32 %v1550, %v1580
        %v1587 = vmul.f32 %v1551, %v1576
        %v1588 = vmul.f32 %v1552, %v1580
        %v1589 = vadd.f32 %v1581, %v1582
        %1590 = vadd.xlane.f32.xlu0 %v1589
        %v1591 = vpop.xlane.xlu0 %1590
        %v1592 = vadd.f32 %v1583, %v1584
        %1593 = vadd.xlane.f32.xlu0 %v1592
        %v1594 = vpop.xlane.xlu0 %1593
        %v1595 = vadd.f32 %v1585, %v1586
        %1596 = vadd.xlane.f32.xlu0 %v1595
        %v1597 = vpop.xlane.xlu0 %1596
        %v1598 = vadd.f32 %v1587, %v1588
        %1599 = vadd.xlane.f32.xlu0 %v1598
        %v1600 = vpop.xlane.xlu0 %1599
        %p1601 = scmp.eq.s32.totalorder %s25, 0
        // Predicated region
        $region45: #{tpu_custom_call.1} parent=43 // pred_check
          %p1602 = pneg %p1601
        $region46: #{tpu_custom_call.1} parent=43 // pred_check_branch
          %1604 = sbr.rel (%p1602) target = $region48
        $region47: #{tpu_custom_call.1} parent=43 // pred_region
          %vm1605 = vcmask 7168
          %1606 = vst.msk [vmem:[#allocation2] sm:$0xff] %vm1605, %v1591
          %1607 = vst.msk [vmem:[#allocation2 + $0x8] sm:$0xff] %vm1605, %v1594
          %1608 = vst.msk [vmem:[#allocation2 + $0x10] sm:$0xff] %vm1605, %v1597
          %1609 = vst.msk [vmem:[#allocation2 + $0x18] sm:$0xff] %vm1605, %v1600
        $region48: #{tpu_custom_call.1} parent=43 // pred_fallthru
          _
        %p1610 = scmp.gt.s32.totalorder %s25, 0
        // Predicated region
        $region49: #{tpu_custom_call.1} parent=43 // pred_check
          %p1611 = pneg %p1610
        $region50: #{tpu_custom_call.1} parent=43 // pred_check_branch
          %1613 = sbr.rel (%p1611) target = $region52
        $region51: #{tpu_custom_call.1} parent=43 // pred_region
          %v1614 = vld [vmem:[#allocation2] sm:$0xff]
          %v1615 = vld [vmem:[#allocation2 + $0x8] sm:$0xff]
          %v1616 = vld [vmem:[#allocation2 + $0x10] sm:$0xff]
          %v1617 = vld [vmem:[#allocation2 + $0x18] sm:$0xff]
          %v1618 = vadd.f32 %v1614, %v1591
          %v1619 = vadd.f32 %v1615, %v1594
          %v1620 = vadd.f32 %v1616, %v1597
          %v1621 = vadd.f32 %v1617, %v1600
          %vm1622 = vcmask 7168
          %1623 = vst.msk [vmem:[#allocation2] sm:$0xff] %vm1622, %v1618
          %1624 = vst.msk [vmem:[#allocation2 + $0x8] sm:$0xff] %vm1622, %v1619
          %1625 = vst.msk [vmem:[#allocation2 + $0x10] sm:$0xff] %vm1622, %v1620
          %1626 = vst.msk [vmem:[#allocation2 + $0x18] sm:$0xff] %vm1622, %v1621
        $region52: #{tpu_custom_call.1} parent=43 // pred_fallthru
          _
        // Predicated region
        $region53: #{tpu_custom_call.1} parent=43 // pred_check
          %p1627 = pneg %p1601
        $region54: #{tpu_custom_call.1} parent=43 // pred_check_branch
          %1629 = sbr.rel (%p1627) target = $region56
        $region55: #{tpu_custom_call.1} parent=43 // pred_region
          %v1630 = vld [vmem:[%s3] sm:$0xff]
          %v1631 = vld [vmem:[%s3 + $0x8] sm:$0xff]
          %v1632 = vld [vmem:[%s3 + $0x10] sm:$0xff]
          %v1633 = vld [vmem:[%s3 + $0x18] sm:$0xff]
          %v1634 = vld [vmem:[#allocation2] sm:$0xff]
          %v1635 = vld [vmem:[#allocation2 + $0x8] sm:$0xff]
          %v1636 = vld [vmem:[#allocation2 + $0x10] sm:$0xff]
          %v1637 = vld [vmem:[#allocation2 + $0x18] sm:$0xff]
          %v1639 = vsel %vm1119, %v1630, 0
          %v1642 = vsel %vm1119, %v1631, 0
          %v1645 = vsel %vm1119, %v1632, 0
          %v1648 = vsel %vm1119, %v1633, 0
          %1650 = vmatprep.subr.mxu0 0.0
          %1651 = vmatpush1.msra.mxu0 %v1634
          %1652 = vmatprep.subr.mxu0 0.0
          %1653 = vmatpush1.msra.mxu0 %v1635
          %1654 = vmatprep.subr.mxu0 0.0
          %1655 = vmatpush1.msra.mxu0 %v1636
          %1656 = vmatprep.subr.mxu0 0.0
          %1657 = vmatpush1.msra.mxu0 %v1637
          %1658 = vmatprep.subr.mxu0 0.0
          %1659 = vmatpush1.msra.mxu0 0.0
          %1660 = vmatprep.subr.mxu0 0.0
          %1661 = vmatpush1.msra.mxu0 0.0
          %1662 = vmatprep.subr.mxu0 0.0
          %1663 = vmatpush1.msra.mxu0 0.0
          %1664 = vmatprep.subr.mxu0 0.0
          %1665 = vmatpush1.msra.mxu0 0.0
          %1666 = vmatprep.subr.mxu0 0.0
          %1667 = vmatpush1.msra.mxu0 0.0
          %1668 = vmatprep.subr.mxu0 0.0
          %1669 = vmatpush1.msra.mxu0 0.0
          %1670 = vmatprep.subr.mxu0 0.0
          %1671 = vmatpush1.msra.mxu0 0.0
          %1672 = vmatprep.subr.mxu0 0.0
          %1673 = vmatpush1.msra.mxu0 0.0
          %1674 = vmatprep.subr.mxu0 0.0
          %1675 = vmatpush1.msra.mxu0 0.0
          %1676 = vmatprep.subr.mxu0 0.0
          %1677 = vmatpush1.msra.mxu0 0.0
          %1678 = vmatprep.subr.mxu0 0.0
          %1679 = vmatpush1.msra.mxu0 0.0
          %1680 = vmatprep.subr.mxu0 0.0
          %1681 = vmatpush1.msra.mxu0 0.0
          %1682 = vmatprep.subr.mxu0 0.0
          %1683 = vmatpush1.msra.mxu0 0.0
          %1684 = vmatprep.subr.mxu0 0.0
          %1685 = vmatpush1.msra.mxu0 0.0
          %1686 = vmatprep.subr.mxu0 0.0
          %1687 = vmatpush1.msra.mxu0 0.0
          %1688 = vmatprep.subr.mxu0 0.0
          %1689 = vmatpush1.msra.mxu0 0.0
          %1690 = vmatprep.subr.mxu0 0.0
          %1691 = vmatpush1.msra.mxu0 0.0
          %1692 = vmatprep.subr.mxu0 0.0
          %1693 = vmatpush1.msra.mxu0 0.0
          %1694 = vmatprep.subr.mxu0 0.0
          %1695 = vmatpush1.msra.mxu0 0.0
          %1696 = vmatprep.subr.mxu0 0.0
          %1697 = vmatpush1.msra.mxu0 0.0
          %1698 = vmatprep.subr.mxu0 0.0
          %1699 = vmatpush1.msra.mxu0 0.0
          %1700 = vmatprep.subr.mxu0 0.0
          %1701 = vmatpush1.msra.mxu0 0.0
          %1702 = vmatprep.subr.mxu0 0.0
          %1703 = vmatpush1.msra.mxu0 0.0
          %1704 = vmatprep.subr.mxu0 0.0
          %1705 = vmatpush1.msra.mxu0 0.0
          %1706 = vmatprep.subr.mxu0 0.0
          %1707 = vmatpush1.msra.mxu0 0.0
          %1708 = vmatprep.subr.mxu0 0.0
          %1709 = vmatpush1.msra.mxu0 0.0
          %1710 = vmatprep.subr.mxu0 0.0
          %1711 = vmatpush1.msra.mxu0 0.0
          %1712 = vmatprep.subr.mxu0 0.0
          %1713 = vmatpush1.msra.mxu0 0.0
          %1714 = vmatprep.mubr.f32.mxu0 0.0
          %1715 = vmatmul.mubr.f32.gmra.mrb[0].mxu0 %v1639
          %v1716 = vpop.f32.mrb[0].mxu0
          %v1717 = vadd.f32 0.0, %v1716
          %v1718 = vpop.f32.mrb[0].mxu0
          %1719 = vmatprep.mubr.f32.mxu0 0.0
          %1720 = vmatmul.mubr.f32.gmra.mrb[0].mxu0 %v1642
          %v1721 = vpop.f32.mrb[0].mxu0
          %v1722 = vadd.f32 0.0, %v1721
          %v1723 = vpop.f32.mrb[0].mxu0
          %1724 = vmatprep.mubr.f32.mxu0 0.0
          %1725 = vmatmul.mubr.f32.gmra.mrb[0].mxu0 %v1645
          %v1726 = vpop.f32.mrb[0].mxu0
          %v1727 = vadd.f32 0.0, %v1726
          %v1728 = vpop.f32.mrb[0].mxu0
          %1729 = vmatprep.mubr.f32.mxu0 0.0
          %1730 = vmatmul.mubr.f32.gmra.mrb[0].mxu0 %v1648
          %v1731 = vpop.f32.mrb[0].mxu0
          %v1732 = vadd.f32 0.0, %v1731
          %v1733 = vpop.f32.mrb[0].mxu0
          %1734 = vdwg.mxu0
          %v1735 = vld [vmem:[%s271] sm:$0xff]
          %v1736 = vld [vmem:[%s271 + $0x8] sm:$0xff]
          %v1737 = vld [vmem:[%s271 + $0x10] sm:$0xff]
          %v1738 = vld [vmem:[%s271 + $0x18] sm:$0xff]
          %v1739 = vld [vmem:[%s271 + $0x20] sm:$0xff]
          %v1740 = vld [vmem:[%s271 + $0x28] sm:$0xff]
          %v1741 = vld [vmem:[%s271 + $0x30] sm:$0xff]
          %v1742 = vld [vmem:[%s271 + $0x38] sm:$0xff]
          %s1743 = scalar_lea.vmem %s5, 1
          %v1744 = vld [vmem:[%s1743] ss:$4 sm:$0x3]
          %1746 = vset.pattern.permute.xlu0 0
          %1747 = vperm.xlu0 %1746, %v1717
          %v1748 = vpop.permute.xlu0 %1747
          %1751 = vset.pattern.permute.xlu0 0
          %1752 = vperm.xlu0 %1751, %v1722
          %v1753 = vpop.permute.xlu0 %1752
          %1756 = vset.pattern.permute.xlu0 0
          %1757 = vperm.xlu0 %1756, %v1727
          %v1758 = vpop.permute.xlu0 %1757
          %1761 = vset.pattern.permute.xlu0 0
          %1762 = vperm.xlu0 %1761, %v1732
          %v1763 = vpop.permute.xlu0 %1762
          %v1765 = vsub.f32 %v1735, %v1748
          %v1766 = vsub.f32 %v1736, %v1748
          %v1767 = vsub.f32 %v1737, %v1753
          %v1768 = vsub.f32 %v1738, %v1753
          %v1769 = vsub.f32 %v1739, %v1758
          %v1770 = vsub.f32 %v1740, %v1758
          %v1771 = vsub.f32 %v1741, %v1763
          %v1772 = vsub.f32 %v1742, %v1763
          %v1774 = vlaneseq
          %v1775 = vshrl.u32 %v1774, 7
          %v1776 = vsub.s32 0, %v1775
          %v1777 = vrot.slane %v1744, %v1776
          %v1778 = vlaneseq
          %v1779 = vshrl.u32 %v1778, 7
          %v1780 = vsub.s32 1, %v1779
          %v1781 = vrot.slane %v1744, %v1780
          %v1784 = vmul.f32 %v1765, %v1777
          %v1785 = vmul.f32 %v1766, %v1781
          %v1786 = vmul.f32 %v1767, %v1777
          %v1787 = vmul.f32 %v1768, %v1781
          %v1788 = vmul.f32 %v1769, %v1777
          %v1789 = vmul.f32 %v1770, %v1781
          %v1790 = vmul.f32 %v1771, %v1777
          %v1791 = vmul.f32 %v1772, %v1781
          %v1792 = vmul.f32 %v1784, %v1784
          %v1793 = vmul.f32 %v1785, %v1785
          %v1794 = vmul.f32 %v1786, %v1786
          %v1795 = vmul.f32 %v1787, %v1787
          %v1796 = vmul.f32 %v1788, %v1788
          %v1797 = vmul.f32 %v1789, %v1789
          %v1798 = vmul.f32 %v1790, %v1790
          %v1799 = vmul.f32 %v1791, %v1791
          %v1800 = vadd.f32 %v1792, %v1793
          %1801 = vadd.xlane.f32.xlu0 %v1800
          %v1802 = vpop.xlane.xlu0 %1801
          %v1803 = vadd.f32 %v1794, %v1795
          %1804 = vadd.xlane.f32.xlu0 %v1803
          %v1805 = vpop.xlane.xlu0 %1804
          %v1806 = vadd.f32 %v1796, %v1797
          %1807 = vadd.xlane.f32.xlu0 %v1806
          %v1808 = vpop.xlane.xlu0 %1807
          %v1809 = vadd.f32 %v1798, %v1799
          %1810 = vadd.xlane.f32.xlu0 %v1809
          %v1811 = vpop.xlane.xlu0 %1810
          %v1812 = vadd.f32 %v1802, 0.0
          %v1813 = vadd.f32 %v1805, 0.0
          %v1814 = vadd.f32 %v1808, 0.0
          %v1815 = vadd.f32 %v1811, 0.0
          %1816 = vmatprep.subr.mxu0 0.0
          %1817 = vmatpush1.msra.mxu0 %v1812
          %1818 = vmatprep.subr.mxu0 0.0
          %1819 = vmatpush1.msra.mxu0 %v1813
          %1820 = vmatprep.subr.mxu0 0.0
          %1821 = vmatpush1.msra.mxu0 %v1814
          %1822 = vmatprep.subr.mxu0 0.0
          %1823 = vmatpush1.msra.mxu0 %v1815
          %1824 = vmatprep.subr.mxu0 0.0
          %1825 = vmatpush1.msra.mxu0 0.0
          %1826 = vmatprep.subr.mxu0 0.0
          %1827 = vmatpush1.msra.mxu0 0.0
          %1828 = vmatprep.subr.mxu0 0.0
          %1829 = vmatpush1.msra.mxu0 0.0
          %1830 = vmatprep.subr.mxu0 0.0
          %1831 = vmatpush1.msra.mxu0 0.0
          %1832 = vmatprep.subr.mxu0 0.0
          %1833 = vmatpush1.msra.mxu0 0.0
          %1834 = vmatprep.subr.mxu0 0.0
          %1835 = vmatpush1.msra.mxu0 0.0
          %1836 = vmatprep.subr.mxu0 0.0
          %1837 = vmatpush1.msra.mxu0 0.0
          %1838 = vmatprep.subr.mxu0 0.0
          %1839 = vmatpush1.msra.mxu0 0.0
          %1840 = vmatprep.subr.mxu0 0.0
          %1841 = vmatpush1.msra.mxu0 0.0
          %1842 = vmatprep.subr.mxu0 0.0
          %1843 = vmatpush1.msra.mxu0 0.0
          %1844 = vmatprep.subr.mxu0 0.0
          %1845 = vmatpush1.msra.mxu0 0.0
          %1846 = vmatprep.subr.mxu0 0.0
          %1847 = vmatpush1.msra.mxu0 0.0
          %1848 = vmatprep.subr.mxu0 0.0
          %1849 = vmatpush1.msra.mxu0 0.0
          %1850 = vmatprep.subr.mxu0 0.0
          %1851 = vmatpush1.msra.mxu0 0.0
          %1852 = vmatprep.subr.mxu0 0.0
          %1853 = vmatpush1.msra.mxu0 0.0
          %1854 = vmatprep.subr.mxu0 0.0
          %1855 = vmatpush1.msra.mxu0 0.0
          %1856 = vmatprep.subr.mxu0 0.0
          %1857 = vmatpush1.msra.mxu0 0.0
          %1858 = vmatprep.subr.mxu0 0.0
          %1859 = vmatpush1.msra.mxu0 0.0
          %1860 = vmatprep.subr.mxu0 0.0
          %1861 = vmatpush1.msra.mxu0 0.0
          %1862 = vmatprep.subr.mxu0 0.0
          %1863 = vmatpush1.msra.mxu0 0.0
          %1864 = vmatprep.subr.mxu0 0.0
          %1865 = vmatpush1.msra.mxu0 0.0
          %1866 = vmatprep.subr.mxu0 0.0
          %1867 = vmatpush1.msra.mxu0 0.0
          %1868 = vmatprep.subr.mxu0 0.0
          %1869 = vmatpush1.msra.mxu0 0.0
          %1870 = vmatprep.subr.mxu0 0.0
          %1871 = vmatpush1.msra.mxu0 0.0
          %1872 = vmatprep.subr.mxu0 0.0
          %1873 = vmatpush1.msra.mxu0 0.0
          %1874 = vmatprep.subr.mxu0 0.0
          %1875 = vmatpush1.msra.mxu0 0.0
          %1876 = vmatprep.subr.mxu0 0.0
          %1877 = vmatpush1.msra.mxu0 0.0
          %1878 = vmatprep.subr.mxu0 0.0
          %1879 = vmatpush1.msra.mxu0 0.0
          %1880 = vmatprep.mubr.f32.mxu0 0.0
          %1881 = vmatmul.mubr.f32.gmra.mrb[0].mxu0 %v1639
          %v1882 = vpop.f32.mrb[0].mxu0
          %v1883 = vadd.f32 1e-05, %v1882
          %v1884 = vpop.f32.mrb[0].mxu0
          %1885 = vmatprep.mubr.f32.mxu0 0.0
          %1886 = vmatmul.mubr.f32.gmra.mrb[0].mxu0 %v1642
          %v1887 = vpop.f32.mrb[0].mxu0
          %v1888 = vadd.f32 1e-05, %v1887
          %v1889 = vpop.f32.mrb[0].mxu0
          %1890 = vmatprep.mubr.f32.mxu0 0.0
          %1891 = vmatmul.mubr.f32.gmra.mrb[0].mxu0 %v1645
          %v1892 = vpop.f32.mrb[0].mxu0
          %v1893 = vadd.f32 1e-05, %v1892
          %v1894 = vpop.f32.mrb[0].mxu0
          %1895 = vmatprep.mubr.f32.mxu0 0.0
          %1896 = vmatmul.mubr.f32.gmra.mrb[0].mxu0 %v1648
          %v1897 = vpop.f32.mrb[0].mxu0
          %v1898 = vadd.f32 1e-05, %v1897
          %v1899 = vpop.f32.mrb[0].mxu0
          %1900 = vdwg.mxu0
          %v1901 = vrsqrt.pop %v1883
          %v1902 = vrsqrt.pop %v1888
          %v1903 = vrsqrt.pop %v1893
          %v1904 = vrsqrt.pop %v1898
          %v1905 = vld [vmem:[%s2] sm:$0xff]
          %v1906 = vld [vmem:[%s2 + $0x8] sm:$0xff]
          %v1907 = vld [vmem:[%s2 + $0x10] sm:$0xff]
          %v1908 = vld [vmem:[%s2 + $0x18] sm:$0xff]
          %v1909 = vld [vmem:[%s281] sm:$0xff]
          %v1910 = vld [vmem:[%s281 + $0x8] sm:$0xff]
          %v1911 = vld [vmem:[%s281 + $0x10] sm:$0xff]
          %v1912 = vld [vmem:[%s281 + $0x18] sm:$0xff]
          %1917 = vrot.lane.b32.xlu0 %v1901, 1
          %v1918 = vpop.permute.xlu0 %1917
          %1919 = vrot.lane.b32.xlu0 %v1902, 1
          %v1920 = vpop.permute.xlu0 %1919
          %1921 = vrot.lane.b32.xlu0 %v1903, 1
          %v1922 = vpop.permute.xlu0 %1921
          %1923 = vrot.lane.b32.xlu0 %v1904, 1
          %v1924 = vpop.permute.xlu0 %1923
          %v1929 = vmul.f32 %v1905, %v1918
          %v1930 = vmul.f32 %v1906, %v1920
          %v1931 = vmul.f32 %v1907, %v1922
          %v1932 = vmul.f32 %v1908, %v1924
          %v1933 = vadd.f32 %v1909, 1.0
          %v1934 = vadd.f32 %v1910, 1.0
          %v1935 = vadd.f32 %v1911, 1.0
          %v1936 = vadd.f32 %v1912, 1.0
          %1941 = vrot.lane.b32.xlu0 %v1933, 1
          %v1942 = vpop.permute.xlu0 %1941
          %1943 = vrot.lane.b32.xlu0 %v1934, 1
          %v1944 = vpop.permute.xlu0 %1943
          %1945 = vrot.lane.b32.xlu0 %v1935, 1
          %v1946 = vpop.permute.xlu0 %1945
          %1947 = vrot.lane.b32.xlu0 %v1936, 1
          %v1948 = vpop.permute.xlu0 %1947
          %v1953 = vmul.f32 %v1929, %v1942
          %v1954 = vmul.f32 %v1930, %v1944
          %v1955 = vmul.f32 %v1931, %v1946
          %v1956 = vmul.f32 %v1932, %v1948
          %1957 = vrot.lane.b32.xlu0 %v1717, 1
          %v1958 = vpop.permute.xlu0 %1957
          %1959 = vrot.lane.b32.xlu0 %v1722, 1
          %v1960 = vpop.permute.xlu0 %1959
          %1961 = vrot.lane.b32.xlu0 %v1727, 1
          %v1962 = vpop.permute.xlu0 %1961
          %1963 = vrot.lane.b32.xlu0 %v1732, 1
          %v1964 = vpop.permute.xlu0 %1963
          %v1969 = vmul.f32 %v1929, %v1958
          %v1970 = vmul.f32 %v1930, %v1960
          %v1971 = vmul.f32 %v1931, %v1962
          %v1972 = vmul.f32 %v1932, %v1964
          %1977 = vrot.lane.b32.xlu0 %v1969, 1
          %v1978 = vpop.permute.xlu0 %1977
          %1979 = vrot.lane.b32.xlu0 %v1970, 1
          %v1980 = vpop.permute.xlu0 %1979
          %1981 = vrot.lane.b32.xlu0 %v1971, 1
          %v1982 = vpop.permute.xlu0 %1981
          %1983 = vrot.lane.b32.xlu0 %v1972, 1
          %v1984 = vpop.permute.xlu0 %1983
          %v1989 = vsub.f32 %v1905, %v1978
          %v1990 = vsub.f32 %v1906, %v1980
          %v1991 = vsub.f32 %v1907, %v1982
          %v1992 = vsub.f32 %v1908, %v1984
          %1993 = vrot.lane.b32.xlu0 %v1933, 2
          %v1994 = vpop.permute.xlu0 %1993
          %1995 = vrot.lane.b32.xlu0 %v1934, 2
          %v1996 = vpop.permute.xlu0 %1995
          %1997 = vrot.lane.b32.xlu0 %v1935, 2
          %v1998 = vpop.permute.xlu0 %1997
          %1999 = vrot.lane.b32.xlu0 %v1936, 2
          %v2000 = vpop.permute.xlu0 %1999
          %v2005 = vmul.f32 %v1989, %v1994
          %v2006 = vmul.f32 %v1990, %v1996
          %v2007 = vmul.f32 %v1991, %v1998
          %v2008 = vmul.f32 %v1992, %v2000
          %2013 = vrot.lane.b32.xlu0 %v1909, 1
          %v2014 = vpop.permute.xlu0 %2013
          %2015 = vrot.lane.b32.xlu0 %v1910, 1
          %v2016 = vpop.permute.xlu0 %2015
          %2017 = vrot.lane.b32.xlu0 %v1911, 1
          %v2018 = vpop.permute.xlu0 %2017
          %2019 = vrot.lane.b32.xlu0 %v1912, 1
          %v2020 = vpop.permute.xlu0 %2019
          %v2025 = vadd.f32 %v2005, %v2014
          %v2026 = vadd.f32 %v2006, %v2016
          %v2027 = vadd.f32 %v2007, %v2018
          %v2028 = vadd.f32 %v2008, %v2020
          %2030 = vset.pattern.permute.xlu0 1
          %2031 = vperm.xlu0 %2030, %v1953
          %v2032 = vpop.permute.xlu0 %2031
          %2035 = vset.pattern.permute.xlu0 1
          %2036 = vperm.xlu0 %2035, %v1954
          %v2037 = vpop.permute.xlu0 %2036
          %2040 = vset.pattern.permute.xlu0 1
          %2041 = vperm.xlu0 %2040, %v1955
          %v2042 = vpop.permute.xlu0 %2041
          %2045 = vset.pattern.permute.xlu0 1
          %2046 = vperm.xlu0 %2045, %v1956
          %v2047 = vpop.permute.xlu0 %2046
          %v2049 = vmul.f32 %v1735, %v2032
          %v2050 = vmul.f32 %v1736, %v2032
          %v2051 = vmul.f32 %v1737, %v2037
          %v2052 = vmul.f32 %v1738, %v2037
          %v2053 = vmul.f32 %v1739, %v2042
          %v2054 = vmul.f32 %v1740, %v2042
          %v2055 = vmul.f32 %v1741, %v2047
          %v2056 = vmul.f32 %v1742, %v2047
          %2058 = vset.pattern.permute.xlu0 2
          %2059 = vperm.xlu0 %2058, %v2025
          %v2060 = vpop.permute.xlu0 %2059
          %2063 = vset.pattern.permute.xlu0 2
          %2064 = vperm.xlu0 %2063, %v2026
          %v2065 = vpop.permute.xlu0 %2064
          %2068 = vset.pattern.permute.xlu0 2
          %2069 = vperm.xlu0 %2068, %v2027
          %v2070 = vpop.permute.xlu0 %2069
          %2073 = vset.pattern.permute.xlu0 2
          %2074 = vperm.xlu0 %2073, %v2028
          %v2075 = vpop.permute.xlu0 %2074
          %v2077 = vadd.f32 %v2049, %v2060
          %v2078 = vadd.f32 %v2050, %v2060
          %v2079 = vadd.f32 %v2051, %v2065
          %v2080 = vadd.f32 %v2052, %v2065
          %v2081 = vadd.f32 %v2053, %v2070
          %v2082 = vadd.f32 %v2054, %v2070
          %v2083 = vadd.f32 %v2055, %v2075
          %v2084 = vadd.f32 %v2056, %v2075
          %v2085 = vxor.u32 %v2077, 2147483648
          %v2086 = vxor.u32 %v2078, 2147483648
          %v2087 = vxor.u32 %v2079, 2147483648
          %v2088 = vxor.u32 %v2080, 2147483648
          %v2089 = vxor.u32 %v2081, 2147483648
          %v2090 = vxor.u32 %v2082, 2147483648
          %v2091 = vxor.u32 %v2083, 2147483648
          %v2092 = vxor.u32 %v2084, 2147483648
          %v2093 = vmul.f32 %v2085, 1.442695
          %v2094 = vpow.pop %v2093
          %v2095 = vmul.f32 %v2086, 1.442695
          %v2096 = vpow.pop %v2095
          %v2097 = vmul.f32 %v2087, 1.442695
          %v2098 = vpow.pop %v2097
          %v2099 = vmul.f32 %v2088, 1.442695
          %v2100 = vpow.pop %v2099
          %v2101 = vmul.f32 %v2089, 1.442695
          %v2102 = vpow.pop %v2101
          %v2103 = vmul.f32 %v2090, 1.442695
          %v2104 = vpow.pop %v2103
          %v2105 = vmul.f32 %v2091, 1.442695
          %v2106 = vpow.pop %v2105
          %v2107 = vmul.f32 %v2092, 1.442695
          %v2108 = vpow.pop %v2107
          %v2109 = vadd.f32 %v2094, 1.0
          %v2110 = vadd.f32 %v2096, 1.0
          %v2111 = vadd.f32 %v2098, 1.0
          %v2112 = vadd.f32 %v2100, 1.0
          %v2113 = vadd.f32 %v2102, 1.0
          %v2114 = vadd.f32 %v2104, 1.0
          %v2115 = vadd.f32 %v2106, 1.0
          %v2116 = vadd.f32 %v2108, 1.0
          %v2117 = vrcp.pop %v2109
          %v2118 = vmul.f32 1.0, %v2117
          %v2119 = vrcp.pop %v2110
          %v2120 = vmul.f32 1.0, %v2119
          %v2121 = vrcp.pop %v2111
          %v2122 = vmul.f32 1.0, %v2121
          %v2123 = vrcp.pop %v2112
          %v2124 = vmul.f32 1.0, %v2123
          %v2125 = vrcp.pop %v2113
          %v2126 = vmul.f32 1.0, %v2125
          %v2127 = vrcp.pop %v2114
          %v2128 = vmul.f32 1.0, %v2127
          %v2129 = vrcp.pop %v2115
          %v2130 = vmul.f32 1.0, %v2129
          %v2131 = vrcp.pop %v2116
          %v2132 = vmul.f32 1.0, %v2131
          %v2133 = vmul.f32 %v2077, %v2118
          %v2134 = vmul.f32 %v2078, %v2120
          %v2135 = vmul.f32 %v2079, %v2122
          %v2136 = vmul.f32 %v2080, %v2124
          %v2137 = vmul.f32 %v2081, %v2126
          %v2138 = vmul.f32 %v2082, %v2128
          %v2139 = vmul.f32 %v2083, %v2130
          %v2140 = vmul.f32 %v2084, %v2132
          %2141 = vst [vmem:[%s271] sm:$0xff] %v2133
          %2142 = vst [vmem:[%s271 + $0x8] sm:$0xff] %v2134
          %2143 = vst [vmem:[%s271 + $0x10] sm:$0xff] %v2135
          %2144 = vst [vmem:[%s271 + $0x18] sm:$0xff] %v2136
          %2145 = vst [vmem:[%s271 + $0x20] sm:$0xff] %v2137
          %2146 = vst [vmem:[%s271 + $0x28] sm:$0xff] %v2138
          %2147 = vst [vmem:[%s271 + $0x30] sm:$0xff] %v2139
          %2148 = vst [vmem:[%s271 + $0x38] sm:$0xff] %v2140
        $region56: #{tpu_custom_call.1} parent=43 // pred_fallthru
          _
        %s2149 = sand.u32 %s176, 1
        %s2150 = scalar_lea.sflag [#allocation4], %s2149
        %s2151 = sand.u32 %s176, 1
        %s2152 = smul.addr %s2151, 64
        %s2153 = scalar_lea.vmem [#allocation3], %s2152
        // Predicated region
        $region57: #{tpu_custom_call.1} parent=43 // pred_check
          %p2154 = pneg %p186
        $region58: #{tpu_custom_call.1} parent=43 // pred_check_branch
          %2156 = sbr.rel (%p2154) target = $region60
        $region59: #{tpu_custom_call.1} parent=43 // pred_region
          %s2158 = ssub.s32 1024, 1024
          %2159 = vsyncadd %s2150, %s2158
          %s2160 = smul.addr %s24, 8
          %s2161 = smul.addr %s2160, 128
          %s2162 = scalar_lea.hbm %s6, %s2161
          %s2163 = sshll.u32 %s2153, 4
          %s2164 = int_to_ptr.vmem [resolvable:$true] %s2163
          %2169 = dma.vmem_to_hbm [thread:$0]  %s2164, 1024, %s2162, %s2150, 256, 256, 16
        $region60: #{tpu_custom_call.1} parent=43 // pred_fallthru
          _
      $region44: #{tpu_custom_call.1} parent=5 // pred_fallthru
        _
      %p2170 = scmp.le.s32.totalorder 2, %s15
      // Predicated region
      $region61: #{tpu_custom_call.1} parent=5 // pred_check
        %p2171 = pneg %p2170
      $region62: #{tpu_custom_call.1} parent=5 // pred_check_branch
        %2173 = sbr.rel (%p2171) target = $region64
      $region63: #{tpu_custom_call.1} parent=5 // pred_region
        %s2174 = ssub.s32 %s15, 2
        // Predicated region
        $region65: #{tpu_custom_call.1} parent=63 // pred_check
          %p2175 = pneg %p192
        $region66: #{tpu_custom_call.1} parent=63 // pred_check_branch
          %2177 = sbr.rel (%p2175) target = $region68
        $region67: #{tpu_custom_call.1} parent=63 // pred_region
          %s2178 = sand.u32 %s177, 1
          %s2179 = scalar_lea.sflag [#allocation4], %s2178
          %s2180 = sand.u32 %s177, 1
          %s2181 = smul.addr %s2180, 64
          %s2182 = scalar_lea.vmem [#allocation3], %s2181
          %2183 = dma.done %s2179, 1024
        $region68: #{tpu_custom_call.1} parent=63 // pred_fallthru
          _
      $region64: #{tpu_custom_call.1} parent=5 // pred_fallthru
        _
    $region6: #{tpu_custom_call.1} parent=1 // loop_footer
      %s19 = sadd.s32 1, %s15
    $region7: #{tpu_custom_call.1} parent=1 // loop_footer_branch
      %14 = sbr.rel target = $region3
    $region8: #{tpu_custom_call.1} parent=1 // loop_exit
      _
    %2184 = vsyncpa [#allocation4], 1
    %s2185 = scalar_lea.sflag [#allocation4], 1
    %2186 = vsyncpa %s2185, 1

</llo_original>
